<compile_context>
chip_gen: v6e
topology: v6e:2x2x1
jax: 0.10.0
libtpu: 0.0.40
codegen_flags: <defaults>
</compile_context>

<pallas_src>
import jax
import jax.numpy as jnp
from jax.experimental import pallas as pl
from jax.experimental.pallas import tpu as pltpu


def channel_mix_kernel(x_ref, xx_ref, tmk_ref, tmr_ref, wk_ref, wv_ref, wr_ref,
                       o_ref, acc_ref):
    """One (tile_t, C) row tile x one tile_h slice of the hidden dimension."""
    h = pl.program_id(1)

    @pl.when(h == 0)
    def _init():
        acc_ref[...] = jnp.zeros_like(acc_ref)

    x = x_ref[...]                       # (tile_t, C) f32
    xx = xx_ref[...]                     # (tile_t, C) f32 (time-shifted rows)
    tmk = tmk_ref[...]                   # (1, C) f32, broadcasts over rows
    xk = x * tmk + xx * (1.0 - tmk)      # token mixing in f32 (VPU)

    # key matmul N-tile -> relu^2 in f32 -> value matmul K-reduction tile.
    # bf16 MXU inputs, f32 accumulation.
    k = jnp.dot(xk.astype(jnp.bfloat16), wk_ref[...],
                preferred_element_type=jnp.float32)        # (tile_t, tile_h)
    k = jnp.square(jnp.maximum(k, 0.0))
    acc_ref[...] += jnp.dot(k.astype(jnp.bfloat16), wv_ref[...],
                            preferred_element_type=jnp.float32)

    @pl.when(h == pl.num_programs(1) - 1)
    def _finalize():
        tmr = tmr_ref[...]
        xr = x * tmr + xx * (1.0 - tmr)
        r = jax.nn.sigmoid(jnp.dot(xr.astype(jnp.bfloat16), wr_ref[...],
                                   preferred_element_type=jnp.float32))
        o_ref[...] = (r * acc_ref[...]).astype(o_ref.dtype)


def rwkv_channel_mix(x, time_mix_k, time_mix_r, w_key, w_value, w_receptance,
                     *, tile_t=256, tile_h=512):
    """RWKV ChannelMix forward.

    x: (B, T, C) f32
    time_mix_k / time_mix_r: (1, C) f32
    w_key: (C, 4C), w_value: (4C, C), w_receptance: (C, C)
        (pre-transposed so the kernel computes x @ W; cast to bf16 here)
    """
    B, T, C = x.shape
    H = w_key.shape[1]
    N = B * T

    tile_t = min(tile_t, N)
    tile_h = min(tile_h, H)
    assert N % tile_t == 0 and tile_t % 8 == 0
    assert H % tile_h == 0 and tile_h % 128 == 0
    assert C % 128 == 0, "pad n_embd to a multiple of 128 for lane-dense I/O"
    # TODO(synk): add wrapper-side C padding for models whose n_embd is not a
    # multiple of 128 (real RWKV configs are).

    # time_shift == ZeroPad2d((0,0,1,-1)): xx[:, t] = x[:, t-1], xx[:, 0] = 0.
    # Precomputed here so the flattened row axis can be tiled with no halo.
    xx = jnp.concatenate([jnp.zeros_like(x[:, :1, :]), x[:, :-1, :]], axis=1)

    x2 = x.reshape(N, C)
    xx2 = xx.reshape(N, C)

    # bf16 weights: full-rate MXU on all generations, half the VMEM/HBM bytes.
    wk = w_key.astype(jnp.bfloat16)
    wv = w_value.astype(jnp.bfloat16)
    wr = w_receptance.astype(jnp.bfloat16)

    grid = (N // tile_t, H // tile_h)

    cost = pl.CostEstimate(
        flops=2 * N * (C * H + H * C + C * C),
        transcendentals=N * C,                                   # sigmoid
        bytes_accessed=3 * N * C * 4 + 2 * (C * H + H * C + C * C),
    )

    out2 = pl.pallas_call(
        channel_mix_kernel,
        out_shape=jax.ShapeDtypeStruct((N, C), x.dtype),
        grid_spec=pltpu.PrefetchScalarGridSpec(
            num_scalar_prefetch=0,
            grid=grid,
            in_specs=[
                pl.BlockSpec((tile_t, C), lambda r, h: (r, 0)),   # x rows
                pl.BlockSpec((tile_t, C), lambda r, h: (r, 0)),   # shifted rows
                pl.BlockSpec((1, C), lambda r, h: (0, 0)),        # time_mix_k
                pl.BlockSpec((1, C), lambda r, h: (0, 0)),        # time_mix_r
                pl.BlockSpec((C, tile_h), lambda r, h: (0, h)),   # Wk N-tile
                pl.BlockSpec((tile_h, C), lambda r, h: (h, 0)),   # Wv K-tile
                pl.BlockSpec((C, C), lambda r, h: (0, 0)),        # Wr (full)
            ],
            out_specs=pl.BlockSpec((tile_t, C), lambda r, h: (r, 0)),
            scratch_shapes=[pltpu.VMEM((tile_t, C), jnp.float32)],
        ),
        compiler_params=pltpu.CompilerParams(
            dimension_semantics=("parallel", "arbitrary"),
            vmem_limit_bytes=48 * 1024 * 1024,
        ),
        cost_estimate=cost,
    )(x2, xx2, time_mix_k, time_mix_r, wk, wv, wr)

    return out2.reshape(B, T, C)


def reference(x, time_mix_k, time_mix_r, w_key, w_value, w_receptance):
    """Pure-JAX reference mirroring the kernel's mixed precision."""
    bf16, f32 = jnp.bfloat16, jnp.float32
    xx = jnp.concatenate([jnp.zeros_like(x[:, :1, :]), x[:, :-1, :]], axis=1)
    xk = x * time_mix_k + xx * (1.0 - time_mix_k)
    xr = x * time_mix_r + xx * (1.0 - time_mix_r)
    k = jnp.einsum("btc,ch->bth", xk.astype(bf16), w_key.astype(bf16),
                   preferred_element_type=f32)
    k = jnp.square(jnp.maximum(k, 0.0))
    kv = jnp.einsum("bth,hc->btc", k.astype(bf16), w_value.astype(bf16),
                    preferred_element_type=f32)
    r = jax.nn.sigmoid(
        jnp.einsum("btc,cd->btd", xr.astype(bf16),
                   w_receptance.astype(bf16), preferred_element_type=f32))
    return r * kv


if __name__ == "__main__":
    B, T, C = 2, 256, 128
    H = 4 * C

    key = jax.random.PRNGKey(0)
    k_x, k_key, k_val, k_rec = jax.random.split(key, 4)

    x = jax.random.normal(k_x, (B, T, C), dtype=jnp.float32)

    # time_mix init exactly as in the module: ones with the first half zeroed.
    tm = jnp.where(jnp.arange(C) < C // 2, 0.0, 1.0).astype(jnp.float32)
    time_mix_k = tm.reshape(1, C)
    time_mix_r = tm.reshape(1, C)

    # nn.Linear weights (shape (out, in) in torch) stored pre-transposed.
    w_key = jax.random.normal(k_key, (C, H), dtype=jnp.float32) * 0.02
    w_value = jax.random.normal(k_val, (H, C), dtype=jnp.float32) * 0.02
    w_receptance = jax.random.normal(k_rec, (C, C), dtype=jnp.float32) * 0.02

    out = rwkv_channel_mix(x, time_mix_k, time_mix_r,
                           w_key, w_value, w_receptance,
                           tile_t=128, tile_h=256)   # exercises both tilings
    out = jax.block_until_ready(out)

    ref = reference(x, time_mix_k, time_mix_r, w_key, w_value, w_receptance)
    assert out.shape == (B, T, C)
    assert jnp.allclose(out, ref, atol=1e-4, rtol=1e-3), (
        float(jnp.max(jnp.abs(out - ref))))

    print("KERNEL_OK")
</pallas_src>

<mosaic_0001>
module attributes {stable_mosaic.version = 11 : i64} {
  func.func @channel_mix_kernel(%arg0: i32, %arg1: i32, %arg2: memref<128x128xf32, #tpu.memory_space<vmem>>, %arg3: memref<128x128xf32, #tpu.memory_space<vmem>>, %arg4: memref<1x128xf32, #tpu.memory_space<vmem>>, %arg5: memref<1x128xf32, #tpu.memory_space<vmem>>, %arg6: memref<128x256xbf16, #tpu.memory_space<vmem>>, %arg7: memref<256x128xbf16, #tpu.memory_space<vmem>>, %arg8: memref<128x128xbf16, #tpu.memory_space<vmem>>, %arg9: memref<128x128xf32, #tpu.memory_space<vmem>>, %arg10: memref<128x128xf32, #tpu.memory_space<vmem>>) attributes {dimension_semantics = [#tpu.dimension_semantics<parallel>, #tpu.dimension_semantics<arbitrary>], iteration_bounds = array<i64: 4, 2>, scalar_prefetch = 0 : i64, scratch_operands = 1 : i64, tpu.core_type = #tpu.core_type<tc>, window_params = [{transform_indices = @transform_0, window_bounds = array<i64: 128, 128>}, {transform_indices = @transform_1, window_bounds = array<i64: 128, 128>}, {pipeline_mode = #tpu.pipeline_mode<synchronous>, transform_indices = @transform_2, window_bounds = array<i64: 1, 128>}, {pipeline_mode = #tpu.pipeline_mode<synchronous>, transform_indices = @transform_3, window_bounds = array<i64: 1, 128>}, {transform_indices = @transform_4, window_bounds = array<i64: 128, 256>}, {transform_indices = @transform_5, window_bounds = array<i64: 256, 128>}, {pipeline_mode = #tpu.pipeline_mode<synchronous>, transform_indices = @transform_6, window_bounds = array<i64: 128, 128>}, {transform_indices = @transform_7, window_bounds = array<i64: 128, 128>}]} {
    %c0_i32 = arith.constant 0 : i32
    %0 = arith.cmpi eq, %arg1, %c0_i32 : i32
    %1 = arith.extui %0 : i1 to i32
    %c0_i32_0 = arith.constant 0 : i32
    %2 = arith.cmpi ne, %1, %c0_i32_0 : i32
    scf.if %2 {
      %cst_18 = arith.constant 0.000000e+00 : f32
      %28 = vector.broadcast %cst_18 : f32 to vector<128x128xf32>
      %c0_19 = arith.constant 0 : index
      %c0_20 = arith.constant 0 : index
      %29 = vector.load %arg10[%c0_19, %c0_20] : memref<128x128xf32, #tpu.memory_space<vmem>>, vector<128x128xf32>
      tpu.vector_store %arg10[%c0_19, %c0_20], %28 {strides = array<i32>} : memref<128x128xf32, #tpu.memory_space<vmem>>, vector<128x128xf32>,
    } else {
    }
    %c0 = arith.constant 0 : index
    %c0_1 = arith.constant 0 : index
    %3 = vector.load %arg2[%c0, %c0_1] : memref<128x128xf32, #tpu.memory_space<vmem>>, vector<128x128xf32>
    %c0_2 = arith.constant 0 : index
    %c0_3 = arith.constant 0 : index
    %4 = vector.load %arg3[%c0_2, %c0_3] : memref<128x128xf32, #tpu.memory_space<vmem>>, vector<128x128xf32>
    %c0_4 = arith.constant 0 : index
    %c0_5 = arith.constant 0 : index
    %5 = vector.load %arg4[%c0_4, %c0_5] : memref<1x128xf32, #tpu.memory_space<vmem>>, vector<1x128xf32>
    %6 = vector.broadcast %5 : vector<1x128xf32> to vector<128x128xf32>
    %7 = arith.mulf %3, %6 : vector<128x128xf32>
    %cst = arith.constant 1.000000e+00 : f32
    %8 = vector.broadcast %cst : f32 to vector<1x128xf32>
    %9 = arith.subf %8, %5 : vector<1x128xf32>
    %10 = vector.broadcast %9 : vector<1x128xf32> to vector<128x128xf32>
    %11 = arith.mulf %4, %10 : vector<128x128xf32>
    %12 = arith.addf %7, %11 : vector<128x128xf32>
    %13 = arith.truncf %12 : vector<128x128xf32> to vector<128x128xbf16>
    %c0_6 = arith.constant 0 : index
    %c0_7 = arith.constant 0 : index
    %14 = vector.load %arg6[%c0_6, %c0_7] : memref<128x256xbf16, #tpu.memory_space<vmem>>, vector<128x256xbf16>
    %cst_8 = arith.constant dense<0.000000e+00> : vector<128x256xf32>
    %15 = tpu.matmul %13, %14, %cst_8 {dimension_numbers = #tpu.dot_dimension_numbers<[1], [0], [0], [1], [0, 0, 1, 1], [], []>} : vector<128x128xbf16>, vector<128x256xbf16>, vector<128x256xf32> -> vector<128x256xf32>
    %cst_9 = arith.constant 0.000000e+00 : f32
    %16 = vector.broadcast %cst_9 : f32 to vector<128x256xf32>
    %17 = arith.maximumf %15, %16 : vector<128x256xf32>
    %18 = arith.mulf %17, %17 : vector<128x256xf32>
    %c0_10 = arith.constant 0 : index
    %c0_11 = arith.constant 0 : index
    %19 = vector.load %arg10[%c0_10, %c0_11] : memref<128x128xf32, #tpu.memory_space<vmem>>, vector<128x128xf32>
    %20 = arith.truncf %18 : vector<128x256xf32> to vector<128x256xbf16>
    %c0_12 = arith.constant 0 : index
    %c0_13 = arith.constant 0 : index
    %21 = vector.load %arg7[%c0_12, %c0_13] : memref<256x128xbf16, #tpu.memory_space<vmem>>, vector<256x128xbf16>
    %cst_14 = arith.constant dense<0.000000e+00> : vector<128x128xf32>
    %22 = tpu.matmul %20, %21, %cst_14 {dimension_numbers = #tpu.dot_dimension_numbers<[1], [0], [0], [1], [0, 0, 1, 1], [], []>} : vector<128x256xbf16>, vector<256x128xbf16>, vector<128x128xf32> -> vector<128x128xf32>
    %23 = arith.addf %19, %22 : vector<128x128xf32>
    %c0_15 = arith.constant 0 : index
    %c0_16 = arith.constant 0 : index
    %24 = vector.load %arg10[%c0_15, %c0_16] : memref<128x128xf32, #tpu.memory_space<vmem>>, vector<128x128xf32>
    tpu.vector_store %arg10[%c0_15, %c0_16], %23 {strides = array<i32>} : memref<128x128xf32, #tpu.memory_space<vmem>>, vector<128x128xf32>,
    %c1_i32 = arith.constant 1 : i32
    %25 = arith.cmpi eq, %arg1, %c1_i32 : i32
    %26 = arith.extui %25 : i1 to i32
    %c0_i32_17 = arith.constant 0 : i32
    %27 = arith.cmpi ne, %26, %c0_i32_17 : i32
    scf.if %27 {
      %c0_18 = arith.constant 0 : index
      %c0_19 = arith.constant 0 : index
      %28 = vector.load %arg5[%c0_18, %c0_19] : memref<1x128xf32, #tpu.memory_space<vmem>>, vector<1x128xf32>
      %29 = vector.broadcast %28 : vector<1x128xf32> to vector<128x128xf32>
      %30 = arith.mulf %3, %29 : vector<128x128xf32>
      %cst_20 = arith.constant 1.000000e+00 : f32
      %31 = vector.broadcast %cst_20 : f32 to vector<1x128xf32>
      %32 = arith.subf %31, %28 : vector<1x128xf32>
      %33 = vector.broadcast %32 : vector<1x128xf32> to vector<128x128xf32>
      %34 = arith.mulf %4, %33 : vector<128x128xf32>
      %35 = arith.addf %30, %34 : vector<128x128xf32>
      %36 = arith.truncf %35 : vector<128x128xf32> to vector<128x128xbf16>
      %c0_21 = arith.constant 0 : index
      %c0_22 = arith.constant 0 : index
      %37 = vector.load %arg8[%c0_21, %c0_22] : memref<128x128xbf16, #tpu.memory_space<vmem>>, vector<128x128xbf16>
      %cst_23 = arith.constant dense<0.000000e+00> : vector<128x128xf32>
      %38 = tpu.matmul %36, %37, %cst_23 {dimension_numbers = #tpu.dot_dimension_numbers<[1], [0], [0], [1], [0, 0, 1, 1], [], []>} : vector<128x128xbf16>, vector<128x128xbf16>, vector<128x128xf32> -> vector<128x128xf32>
      %39 = arith.negf %38 : vector<128x128xf32>
      %40 = math.exp %39 : vector<128x128xf32>
      %cst_24 = arith.constant 1.000000e+00 : f32
      %41 = vector.broadcast %cst_24 : f32 to vector<128x128xf32>
      %42 = arith.addf %41, %40 : vector<128x128xf32>
      %43 = arith.divf %41, %42 : vector<128x128xf32>
      %c0_25 = arith.constant 0 : index
      %c0_26 = arith.constant 0 : index
      %44 = vector.load %arg10[%c0_25, %c0_26] : memref<128x128xf32, #tpu.memory_space<vmem>>, vector<128x128xf32>
      %45 = arith.mulf %43, %44 : vector<128x128xf32>
      %c0_27 = arith.constant 0 : index
      %c0_28 = arith.constant 0 : index
      %46 = vector.load %arg9[%c0_27, %c0_28] : memref<128x128xf32, #tpu.memory_space<vmem>>, vector<128x128xf32>
      tpu.vector_store %arg9[%c0_27, %c0_28], %45 {strides = array<i32>} : memref<128x128xf32, #tpu.memory_space<vmem>>, vector<128x128xf32>,
    } else {
    }
    return
  }
  func.func @transform_0(%arg0: i32, %arg1: i32) -> (i32, i32) {
    %c0_i32 = arith.constant 0 : i32
    %c0_i32_0 = arith.constant 0 : i32
    return %arg0, %c0_i32 : i32, i32
  }
  func.func @transform_1(%arg0: i32, %arg1: i32) -> (i32, i32) {
    %c0_i32 = arith.constant 0 : i32
    %c0_i32_0 = arith.constant 0 : i32
    return %arg0, %c0_i32 : i32, i32
  }
  func.func @transform_2(%arg0: i32, %arg1: i32) -> (i32, i32) {
    %c0_i32 = arith.constant 0 : i32
    %c0_i32_0 = arith.constant 0 : i32
    %c0_i32_1 = arith.constant 0 : i32
    return %c0_i32, %c0_i32_0 : i32, i32
  }
  func.func @transform_3(%arg0: i32, %arg1: i32) -> (i32, i32) {
    %c0_i32 = arith.constant 0 : i32
    %c0_i32_0 = arith.constant 0 : i32
    %c0_i32_1 = arith.constant 0 : i32
    return %c0_i32, %c0_i32_0 : i32, i32
  }
  func.func @transform_4(%arg0: i32, %arg1: i32) -> (i32, i32) {
    %c0_i32 = arith.constant 0 : i32
    %c0_i32_0 = arith.constant 0 : i32
    return %c0_i32, %arg1 : i32, i32
  }
  func.func @transform_5(%arg0: i32, %arg1: i32) -> (i32, i32) {
    %c0_i32 = arith.constant 0 : i32
    %c0_i32_0 = arith.constant 0 : i32
    return %arg1, %c0_i32 : i32, i32
  }
  func.func @transform_6(%arg0: i32, %arg1: i32) -> (i32, i32) {
    %c0_i32 = arith.constant 0 : i32
    %c0_i32_0 = arith.constant 0 : i32
    %c0_i32_1 = arith.constant 0 : i32
    return %c0_i32, %c0_i32_0 : i32, i32
  }
  func.func @transform_7(%arg0: i32, %arg1: i32) -> (i32, i32) {
    %c0_i32 = arith.constant 0 : i32
    %c0_i32_0 = arith.constant 0 : i32
    return %arg0, %c0_i32 : i32, i32
  }
}

</mosaic_0001>

<llo_original>
// kernel: tpu_custom_call.1
$region0: #{tpu_custom_call.1}
  #allocation0 [shape = 'u32[]', space=smem, size = 0x4, offset = 0x4, fixed_abs, tag = 'smem constant byte address 0x4 - core index']
  #allocation1 [shape = 'u32[144,128]{1,0:T(1,128)}', space=vmem, size = 0x12000, scoped, tag = 'internal scratch']
  #allocation2 [shape = 'f32[128,128]{1,0:T(8,128)}', space=vmem, size = 0x10000, scoped, tag = 'scratch operand']
  %s0 = inlined_call_operand.hbm [shape: f32[512,128], index: 0, kind: input, shape index: {}]
  %s1 = inlined_call_operand.hbm [shape: f32[512,128], index: 1, kind: input, shape index: {}]
  %s2 = inlined_call_operand.vmem [shape: f32[1,128], index: 2, kind: input, shape index: {}]
  %s3 = inlined_call_operand.vmem [shape: f32[1,128], index: 3, kind: input, shape index: {}]
  %s4 = inlined_call_operand.hbm [shape: bf16[128,512], index: 4, kind: input, shape index: {}]
  %s5 = inlined_call_operand.hbm [shape: bf16[512,128], index: 5, kind: input, shape index: {}]
  %s6 = inlined_call_operand.hbm [shape: bf16[128,128], index: 6, kind: input, shape index: {}]
  %s7 = inlined_call_operand.hbm [shape: f32[512,128], index: 7, kind: output, shape index: {}]
  %s8 = sld [smem:[#allocation0]]
  $region89: #{tpu_custom_call.1} parent=0
    _
  %s10 = ssub.s32 1, %s8
  %s11 = scalar_select 0, %s10, %s8
  $region1: #{tpu_custom_call.1} parent=0
    #allocation3 [shape = 'u8[131072]{0}', space=vmem, size = 0x20000, scoped, tag = 'input window, operand 0']
    #allocation4 [shape = 's32[2]{0}', space=sflag, size = 0x8, scoped, tag = 'scoped memory for tpu_custom_call.1']
    #allocation5 [shape = 's32[2]{0}', space=sflag, size = 0x8, scoped, tag = 'scoped memory for tpu_custom_call.1']
    #allocation6 [shape = 'u8[131072]{0}', space=vmem, size = 0x20000, scoped, tag = 'input window, operand 1']
    #allocation7 [shape = 's32[2]{0}', space=sflag, size = 0x8, scoped, tag = 'scoped memory for tpu_custom_call.1']
    #allocation8 [shape = 'u8[131072]{0}', space=vmem, size = 0x20000, scoped, tag = 'input window, operand 4']
    #allocation9 [shape = 'u8[131072]{0}', space=vmem, size = 0x20000, scoped, tag = 'input window, operand 5']
    #allocation10 [shape = 's32[2]{0}', space=sflag, size = 0x8, scoped, tag = 'scoped memory for tpu_custom_call.1']
    #allocation11 [shape = 'u8[32768]{0}', space=vmem, size = 0x8000, scoped, tag = 'input window, operand 6, single buffered']
    #allocation12 [shape = 'u8[131072]{0}', space=vmem, size = 0x20000, scoped, tag = 'output window, operand 0']
    %12 = vsyncpa [#allocation4], 0
    %s13 = scalar_lea.sflag [#allocation4], 1
    %14 = vsyncpa %s13, 0
    %15 = vsyncpa [#allocation7], 0
    %s16 = scalar_lea.sflag [#allocation7], 1
    %17 = vsyncpa %s16, 0
    %18 = vsyncpa [#allocation10], 0
    %s19 = scalar_lea.sflag [#allocation10], 1
    %20 = vsyncpa %s19, 0
    %21 = vsyncpa [#allocation5], 0
    %s22 = scalar_lea.sflag [#allocation5], 1
    %23 = vsyncpa %s22, 0
    loop: start=0, step=1, limit=10
    $region2: #{tpu_custom_call.1} parent=1 // loop_pre_header
      _
    $region3: #{tpu_custom_call.1} parent=1 // loop_header
      %s25 = sphi 0, %s29
      %p26 = scmp.ge.s32.totalorder %s25, 10
      %s32 = sphi 0, %s44
      %s33 = sphi 0, %s40
      %s34 = sphi 0, %s32
      %s35 = sphi 0, %s33
      %s36 = sphi 0, %s34
      %s37 = sphi 0, %s35
      %s47 = sphi 0, %s49
      %s50 = sphi 0, %s47
      %s51 = sphi 0, %s50
      %s67 = sphi 0, %s51
      %s73 = sphi 0, %s75
      %s76 = sphi 0, %s73
      %s77 = sphi 0, %s76
      %s93 = sphi 0, %s77
      %s97 = sphi 0, %s97
      %s99 = sphi 0, %s97
      %s100 = sphi 0, %s99
      %s114 = sphi 0, %s100
      %s118 = sphi 0, %s118
      %s120 = sphi 0, %s118
      %s121 = sphi 0, %s120
      %s135 = sphi 0, %s121
      %s141 = sphi 0, %s143
      %s144 = sphi 0, %s141
      %s145 = sphi 0, %s144
      %s161 = sphi 0, %s145
      %s167 = sphi 0, %s169
      %s170 = sphi 0, %s167
      %s171 = sphi 0, %s170
      %s187 = sphi 0, %s171
      %s191 = sphi 0, %s191
      %s193 = sphi 0, %s191
      %s194 = sphi 0, %s193
      %s208 = sphi 0, %s194
      %s214 = sphi 0, %s216
      %s217 = sphi 0, %s214
      %s218 = sphi 0, %s217
      %s234 = sphi 0, %s218
    $region4: #{tpu_custom_call.1} parent=1 // loop_header_branch
      %28 = sbr.rel (%p26) target = $region8
    $region5: #{tpu_custom_call.1} parent=1 // loop_body
      %s30 = ssub.s32 %s25, 1
      %s31 = ssub.s32 %s25, 2
      %s38 = sadd.s32 1, %s33
      %p39 = scmp.ge.s32.totalorder %s38, 2
      %s40 = scalar_select %p39, 0, %s38
      %s41 = sadd.s32 1, %s32
      %s42 = scalar_select %p39, %s41, %s32
      %p43 = scmp.ge.s32.totalorder %s42, 4
      %s44 = scalar_select %p43, 0, %s42
      %s45 = ssub.s32 %s32, %s44
      %p46 = scmp.eq.s32.totalorder %s45, 0
      %s48 = sadd.s32 %s47, 1
      %s49 = scalar_select %p46, %s47, %s48
      %p52 = pneg %p46
      %p53 = scmp.eq.s32.totalorder %s25, 7
      %p54 = por %p52, %p53
      %p55 = scmp.ne.s32.totalorder %s47, %s50
      %p56 = scmp.eq.s32.totalorder %s25, 0
      %p57 = por %p55, %p56
      %p58 = scmp.ne.s32.totalorder %s47, %s50
      %p59 = scmp.eq.s32.totalorder %s30, 7
      %p60 = por %p58, %p59
      %p61 = scmp.ne.s32.totalorder %s50, %s51
      %p62 = scmp.eq.s32.totalorder %s30, 0
      %p63 = por %p61, %p62
      %p64 = scmp.ne.s32.totalorder %s50, %s51
      %p65 = scmp.eq.s32.totalorder %s31, 7
      %p66 = por %p64, %p65
      %p68 = scmp.ne.s32.totalorder %s51, %s67
      %p69 = scmp.eq.s32.totalorder %s31, 0
      %p70 = por %p68, %p69
      %s71 = ssub.s32 %s32, %s44
      %p72 = scmp.eq.s32.totalorder %s71, 0
      %s74 = sadd.s32 %s73, 1
      %s75 = scalar_select %p72, %s73, %s74
      %p78 = pneg %p72
      %p79 = scmp.eq.s32.totalorder %s25, 7
      %p80 = por %p78, %p79
      %p81 = scmp.ne.s32.totalorder %s73, %s76
      %p82 = scmp.eq.s32.totalorder %s25, 0
      %p83 = por %p81, %p82
      %p84 = scmp.ne.s32.totalorder %s73, %s76
      %p85 = scmp.eq.s32.totalorder %s30, 7
      %p86 = por %p84, %p85
      %p87 = scmp.ne.s32.totalorder %s76, %s77
      %p88 = scmp.eq.s32.totalorder %s30, 0
      %p89 = por %p87, %p88
      %p90 = scmp.ne.s32.totalorder %s76, %s77
      %p91 = scmp.eq.s32.totalorder %s31, 7
      %p92 = por %p90, %p91
      %p94 = scmp.ne.s32.totalorder %s77, %s93
      %p95 = scmp.eq.s32.totalorder %s31, 0
      %p96 = por %p94, %p95
      %s98 = sadd.s32 %s97, 1
      %p101 = scmp.eq.s32.totalorder %s25, 7
      %p102 = scmp.ne.s32.totalorder %s97, %s99
      %p103 = scmp.eq.s32.totalorder %s25, 0
      %p104 = por %p102, %p103
      %p105 = scmp.ne.s32.totalorder %s97, %s99
      %p106 = scmp.eq.s32.totalorder %s30, 7
      %p107 = por %p105, %p106
      %p108 = scmp.ne.s32.totalorder %s99, %s100
      %p109 = scmp.eq.s32.totalorder %s30, 0
      %p110 = por %p108, %p109
      %p111 = scmp.ne.s32.totalorder %s99, %s100
      %p112 = scmp.eq.s32.totalorder %s31, 7
      %p113 = por %p111, %p112
      %p115 = scmp.ne.s32.totalorder %s100, %s114
      %p116 = scmp.eq.s32.totalorder %s31, 0
      %p117 = por %p115, %p116
      %s119 = sadd.s32 %s118, 1
      %p122 = scmp.eq.s32.totalorder %s25, 7
      %p123 = scmp.ne.s32.totalorder %s118, %s120
      %p124 = scmp.eq.s32.totalorder %s25, 0
      %p125 = por %p123, %p124
      %p126 = scmp.ne.s32.totalorder %s118, %s120
      %p127 = scmp.eq.s32.totalorder %s30, 7
      %p128 = por %p126, %p127
      %p129 = scmp.ne.s32.totalorder %s120, %s121
      %p130 = scmp.eq.s32.totalorder %s30, 0
      %p131 = por %p129, %p130
      %p132 = scmp.ne.s32.totalorder %s120, %s121
      %p133 = scmp.eq.s32.totalorder %s31, 7
      %p134 = por %p132, %p133
      %p136 = scmp.ne.s32.totalorder %s121, %s135
      %p137 = scmp.eq.s32.totalorder %s31, 0
      %p138 = por %p136, %p137
      %s139 = ssub.s32 %s33, %s40
      %p140 = scmp.eq.s32.totalorder %s139, 0
      %s142 = sadd.s32 %s141, 1
      %s143 = scalar_select %p140, %s141, %s142
      %p146 = pneg %p140
      %p147 = scmp.eq.s32.totalorder %s25, 7
      %p148 = por %p146, %p147
      %p149 = scmp.ne.s32.totalorder %s141, %s144
      %p150 = scmp.eq.s32.totalorder %s25, 0
      %p151 = por %p149, %p150
      %p152 = scmp.ne.s32.totalorder %s141, %s144
      %p153 = scmp.eq.s32.totalorder %s30, 7
      %p154 = por %p152, %p153
      %p155 = scmp.ne.s32.totalorder %s144, %s145
      %p156 = scmp.eq.s32.totalorder %s30, 0
      %p157 = por %p155, %p156
      %p158 = scmp.ne.s32.totalorder %s144, %s145
      %p159 = scmp.eq.s32.totalorder %s31, 7
      %p160 = por %p158, %p159
      %p162 = scmp.ne.s32.totalorder %s145, %s161
      %p163 = scmp.eq.s32.totalorder %s31, 0
      %p164 = por %p162, %p163
      %s165 = ssub.s32 %s33, %s40
      %p166 = scmp.eq.s32.totalorder %s165, 0
      %s168 = sadd.s32 %s167, 1
      %s169 = scalar_select %p166, %s167, %s168
      %p172 = pneg %p166
      %p173 = scmp.eq.s32.totalorder %s25, 7
      %p174 = por %p172, %p173
      %p175 = scmp.ne.s32.totalorder %s167, %s170
      %p176 = scmp.eq.s32.totalorder %s25, 0
      %p177 = por %p175, %p176
      %p178 = scmp.ne.s32.totalorder %s167, %s170
      %p179 = scmp.eq.s32.totalorder %s30, 7
      %p180 = por %p178, %p179
      %p181 = scmp.ne.s32.totalorder %s170, %s171
      %p182 = scmp.eq.s32.totalorder %s30, 0
      %p183 = por %p181, %p182
      %p184 = scmp.ne.s32.totalorder %s170, %s171
      %p185 = scmp.eq.s32.totalorder %s31, 7
      %p186 = por %p184, %p185
      %p188 = scmp.ne.s32.totalorder %s171, %s187
      %p189 = scmp.eq.s32.totalorder %s31, 0
      %p190 = por %p188, %p189
      %s192 = sadd.s32 %s191, 1
      %p195 = scmp.eq.s32.totalorder %s25, 7
      %p196 = scmp.ne.s32.totalorder %s191, %s193
      %p197 = scmp.eq.s32.totalorder %s25, 0
      %p198 = por %p196, %p197
      %p199 = scmp.ne.s32.totalorder %s191, %s193
      %p200 = scmp.eq.s32.totalorder %s30, 7
      %p201 = por %p199, %p200
      %p202 = scmp.ne.s32.totalorder %s193, %s194
      %p203 = scmp.eq.s32.totalorder %s30, 0
      %p204 = por %p202, %p203
      %p205 = scmp.ne.s32.totalorder %s193, %s194
      %p206 = scmp.eq.s32.totalorder %s31, 7
      %p207 = por %p205, %p206
      %p209 = scmp.ne.s32.totalorder %s194, %s208
      %p210 = scmp.eq.s32.totalorder %s31, 0
      %p211 = por %p209, %p210
      %s212 = ssub.s32 %s32, %s44
      %p213 = scmp.eq.s32.totalorder %s212, 0
      %s215 = sadd.s32 %s214, 1
      %s216 = scalar_select %p213, %s214, %s215
      %p219 = pneg %p213
      %p220 = scmp.eq.s32.totalorder %s25, 7
      %p221 = por %p219, %p220
      %p222 = scmp.ne.s32.totalorder %s214, %s217
      %p223 = scmp.eq.s32.totalorder %s25, 0
      %p224 = por %p222, %p223
      %p225 = scmp.ne.s32.totalorder %s214, %s217
      %p226 = scmp.eq.s32.totalorder %s30, 7
      %p227 = por %p225, %p226
      %p228 = scmp.ne.s32.totalorder %s217, %s218
      %p229 = scmp.eq.s32.totalorder %s30, 0
      %p230 = por %p228, %p229
      %p231 = scmp.ne.s32.totalorder %s217, %s218
      %p232 = scmp.eq.s32.totalorder %s31, 7
      %p233 = por %p231, %p232
      %p235 = scmp.ne.s32.totalorder %s218, %s234
      %p236 = scmp.eq.s32.totalorder %s31, 0
      %p237 = por %p235, %p236
      %p238 = scmp.le.s32.totalorder 1, %s25
      %p239 = scmp.lt.s32.totalorder %s25, 9
      %p240 = pnand %p238, %p239
      %p241 = pneg %p240
      // Predicated region
      $region9: #{tpu_custom_call.1} parent=5 // pred_check
        _
      $region10: #{tpu_custom_call.1} parent=5 // pred_check_branch
        %243 = sbr.rel (%p240) target = $region12
      $region11: #{tpu_custom_call.1} parent=5 // pred_region
        %s244 = ssub.s32 %s25, 1
        // Predicated region
        $region13: #{tpu_custom_call.1} parent=11 // pred_check
          %p245 = pneg %p110
        $region14: #{tpu_custom_call.1} parent=11 // pred_check_branch
          %247 = sbr.rel (%p245) target = $region16
        $region15: #{tpu_custom_call.1} parent=11 // pred_region
          _
        $region16: #{tpu_custom_call.1} parent=11 // pred_fallthru
          _
        // Predicated region
        $region17: #{tpu_custom_call.1} parent=11 // pred_check
          %p248 = pneg %p131
        $region18: #{tpu_custom_call.1} parent=11 // pred_check_branch
          %250 = sbr.rel (%p248) target = $region20
        $region19: #{tpu_custom_call.1} parent=11 // pred_region
          _
        $region20: #{tpu_custom_call.1} parent=11 // pred_fallthru
          _
        // Predicated region
        $region21: #{tpu_custom_call.1} parent=11 // pred_check
          %p251 = pneg %p204
        $region22: #{tpu_custom_call.1} parent=11 // pred_check_branch
          %253 = sbr.rel (%p251) target = $region24
        $region23: #{tpu_custom_call.1} parent=11 // pred_region
          %s255 = ssub.s32 1024, 1024
          %256 = vsyncadd [#allocation10], %s255
          %s257 = sshll.u32 [#allocation11], 4
          %s258 = int_to_ptr.vmem [resolvable:$true] %s257
          %263 = dma.hbm_to_vmem [thread:$0]  %s6, 1024, %s258, [#allocation10], 64, 64, 4
        $region24: #{tpu_custom_call.1} parent=11 // pred_fallthru
          _
      $region12: #{tpu_custom_call.1} parent=5 // pred_fallthru
        _
      %p264 = scmp.lt.s32.totalorder %s25, 8
      // Predicated region
      $region25: #{tpu_custom_call.1} parent=5 // pred_check
        %p265 = pneg %p264
      $region26: #{tpu_custom_call.1} parent=5 // pred_check_branch
        %267 = sbr.rel (%p265) target = $region28
      $region27: #{tpu_custom_call.1} parent=5 // pred_region
        // Predicated region
        $region29: #{tpu_custom_call.1} parent=27 // pred_check
          %p268 = pneg %p57
        $region30: #{tpu_custom_call.1} parent=27 // pred_check_branch
          %270 = sbr.rel (%p268) target = $region32
        $region31: #{tpu_custom_call.1} parent=27 // pred_region
          %s271 = sand.u32 %s47, 1
          %s272 = scalar_lea.sflag [#allocation4], %s271
          %s273 = sand.u32 %s47, 1
          %s274 = smul.addr %s273, 128
          %s275 = scalar_lea.vmem [#allocation3], %s274
          %s276 = smul.u32 16, %s32
          %s278 = ssub.s32 2048, 2048
          %279 = vsyncadd %s272, %s278
          %s280 = smul.addr %s276, 128
          %s281 = scalar_lea.hbm %s0, %s280
          %s282 = sshll.u32 %s275, 4
          %s283 = int_to_ptr.vmem [resolvable:$true] %s282
          %288 = dma.hbm_to_vmem [thread:$0]  %s281, 2048, %s283, %s272, 128, 128, 8
        $region32: #{tpu_custom_call.1} parent=27 // pred_fallthru
          _
        // Predicated region
        $region33: #{tpu_custom_call.1} parent=27 // pred_check
          %p289 = pneg %p83
        $region34: #{tpu_custom_call.1} parent=27 // pred_check_branch
          %291 = sbr.rel (%p289) target = $region36
        $region35: #{tpu_custom_call.1} parent=27 // pred_region
          %s292 = sand.u32 %s25, 1
          %s293 = scalar_lea.sflag [#allocation7], %s292
          %s294 = sand.u32 %s73, 1
          %s295 = smul.addr %s294, 128
          %s296 = scalar_lea.vmem [#allocation6], %s295
          %s297 = smul.u32 16, %s32
          %s299 = ssub.s32 2048, 2048
          %300 = vsyncadd %s293, %s299
          %s301 = smul.addr %s297, 128
          %s302 = scalar_lea.hbm %s1, %s301
          %s303 = sshll.u32 %s296, 4
          %s304 = int_to_ptr.vmem [resolvable:$true] %s303
          %309 = dma.hbm_to_vmem [thread:$0]  %s302, 2048, %s304, %s293, 128, 128, 8
        $region36: #{tpu_custom_call.1} parent=27 // pred_fallthru
          _
        // Predicated region
        $region37: #{tpu_custom_call.1} parent=27 // pred_check
          %p310 = pneg %p151
        $region38: #{tpu_custom_call.1} parent=27 // pred_check_branch
          %312 = sbr.rel (%p310) target = $region40
        $region39: #{tpu_custom_call.1} parent=27 // pred_region
          %s313 = sand.u32 %s25, 1
          %s314 = scalar_lea.sflag [#allocation7], %s313
          %s315 = sand.u32 %s141, 1
          %s316 = smul.addr %s315, 128
          %s317 = scalar_lea.vmem [#allocation8], %s316
          %s318 = smul.u32 2, %s33
          %s320 = ssub.s32 2048, 2048
          %321 = vsyncadd %s314, %s320
          %s322 = smul.addr %s318, 64
          %s323 = scalar_lea.hbm %s4, %s322
          %s324 = sshll.u32 %s317, 4
          %s325 = int_to_ptr.vmem [resolvable:$true] %s324
          %330 = dma.hbm_to_vmem [thread:$0]  %s323, 2048, %s325, %s314, 256, 128, 8
        $region40: #{tpu_custom_call.1} parent=27 // pred_fallthru
          _
        // Predicated region
        $region41: #{tpu_custom_call.1} parent=27 // pred_check
          %p331 = pneg %p177
        $region42: #{tpu_custom_call.1} parent=27 // pred_check_branch
          %333 = sbr.rel (%p331) target = $region44
        $region43: #{tpu_custom_call.1} parent=27 // pred_region
          %s334 = sand.u32 %s25, 1
          %s335 = scalar_lea.sflag [#allocation10], %s334
          %s336 = sand.u32 %s167, 1
          %s337 = smul.addr %s336, 128
          %s338 = scalar_lea.vmem [#allocation9], %s337
          %s339 = smul.u32 32, %s33
          %s341 = ssub.s32 2048, 2048
          %342 = vsyncadd %s335, %s341
          %s343 = smul.addr %s339, 64
          %s344 = scalar_lea.hbm %s5, %s343
          %s345 = sshll.u32 %s338, 4
          %s346 = int_to_ptr.vmem [resolvable:$true] %s345
          %351 = dma.hbm_to_vmem [thread:$0]  %s344, 2048, %s346, %s335, 64, 64, 4
        $region44: #{tpu_custom_call.1} parent=27 // pred_fallthru
          _
      $region28: #{tpu_custom_call.1} parent=5 // pred_fallthru
        _
      %p352 = scmp.le.s32.totalorder 1, %s25
      %p353 = scmp.lt.s32.totalorder %s25, 9
      %p354 = pnand %p352, %p353
      %p355 = pneg %p354
      // Predicated region
      $region45: #{tpu_custom_call.1} parent=5 // pred_check
        _
      $region46: #{tpu_custom_call.1} parent=5 // pred_check_branch
        %357 = sbr.rel (%p354) target = $region48
      $region47: #{tpu_custom_call.1} parent=5 // pred_region
        %s358 = ssub.s32 %s25, 1
        %s359 = sand.u32 %s50, 1
        %s360 = scalar_lea.sflag [#allocation4], %s359
        %s361 = sand.u32 %s50, 1
        %s362 = smul.addr %s361, 128
        %s363 = scalar_lea.vmem [#allocation3], %s362
        // Predicated region
        $region49: #{tpu_custom_call.1} parent=47 // pred_check
          %p364 = pneg %p63
        $region50: #{tpu_custom_call.1} parent=47 // pred_check_branch
          %366 = sbr.rel (%p364) target = $region52
        $region51: #{tpu_custom_call.1} parent=47 // pred_region
          %367 = dma.done %s360, 2048
        $region52: #{tpu_custom_call.1} parent=47 // pred_fallthru
          _
        %s368 = sand.u32 %s30, 1
        %s369 = scalar_lea.sflag [#allocation7], %s368
        %s370 = sand.u32 %s76, 1
        %s371 = smul.addr %s370, 128
        %s372 = scalar_lea.vmem [#allocation6], %s371
        // Predicated region
        $region53: #{tpu_custom_call.1} parent=47 // pred_check
          %p373 = pneg %p89
        $region54: #{tpu_custom_call.1} parent=47 // pred_check_branch
          %375 = sbr.rel (%p373) target = $region56
        $region55: #{tpu_custom_call.1} parent=47 // pred_region
          %376 = dma.done %s369, 2048
        $region56: #{tpu_custom_call.1} parent=47 // pred_fallthru
          _
        %s377 = sand.u32 %s30, 1
        %s378 = scalar_lea.sflag [#allocation7], %s377
        %s379 = sand.u32 %s144, 1
        %s380 = smul.addr %s379, 128
        %s381 = scalar_lea.vmem [#allocation8], %s380
        // Predicated region
        $region57: #{tpu_custom_call.1} parent=47 // pred_check
          %p382 = pneg %p157
        $region58: #{tpu_custom_call.1} parent=47 // pred_check_branch
          %384 = sbr.rel (%p382) target = $region60
        $region59: #{tpu_custom_call.1} parent=47 // pred_region
          %385 = dma.done %s378, 2048
        $region60: #{tpu_custom_call.1} parent=47 // pred_fallthru
          _
        %s386 = sand.u32 %s30, 1
        %s387 = scalar_lea.sflag [#allocation10], %s386
        %s388 = sand.u32 %s170, 1
        %s389 = smul.addr %s388, 128
        %s390 = scalar_lea.vmem [#allocation9], %s389
        // Predicated region
        $region61: #{tpu_custom_call.1} parent=47 // pred_check
          %p391 = pneg %p183
        $region62: #{tpu_custom_call.1} parent=47 // pred_check_branch
          %393 = sbr.rel (%p391) target = $region64
        $region63: #{tpu_custom_call.1} parent=47 // pred_region
          %394 = dma.done %s387, 2048
        $region64: #{tpu_custom_call.1} parent=47 // pred_fallthru
          _
        // Predicated region
        $region65: #{tpu_custom_call.1} parent=47 // pred_check
          %p395 = pneg %p204
        $region66: #{tpu_custom_call.1} parent=47 // pred_check_branch
          %397 = sbr.rel (%p395) target = $region68
        $region67: #{tpu_custom_call.1} parent=47 // pred_region
          %398 = dma.done [#allocation10], 1024
        $region68: #{tpu_custom_call.1} parent=47 // pred_fallthru
          _
        %s399 = sand.u32 %s50, 1
        %s400 = scalar_lea.sflag [#allocation4], %s399
        %s401 = sand.u32 %s50, 1
        %s402 = smul.addr %s401, 128
        %s403 = scalar_lea.vmem [#allocation3], %s402
        %p404 = pneg %p63
        %p405 = pneg %p60
        %s406 = sand.u32 %s30, 1
        %s407 = scalar_lea.sflag [#allocation7], %s406
        %s408 = sand.u32 %s76, 1
        %s409 = smul.addr %s408, 128
        %s410 = scalar_lea.vmem [#allocation6], %s409
        %p411 = pneg %p89
        %p412 = pneg %p86
        %p413 = pneg %p110
        %p414 = pneg %p107
        %p415 = pneg %p131
        %p416 = pneg %p128
        %s417 = sand.u32 %s30, 1
        %s418 = scalar_lea.sflag [#allocation7], %s417
        %s419 = sand.u32 %s144, 1
        %s420 = smul.addr %s419, 128
        %s421 = scalar_lea.vmem [#allocation8], %s420
        %p422 = pneg %p157
        %p423 = pneg %p154
        %s424 = sand.u32 %s30, 1
        %s425 = scalar_lea.sflag [#allocation10], %s424
        %s426 = sand.u32 %s170, 1
        %s427 = smul.addr %s426, 128
        %s428 = scalar_lea.vmem [#allocation9], %s427
        %p429 = pneg %p183
        %p430 = pneg %p180
        %p431 = pneg %p204
        %p432 = pneg %p201
        %p433 = pneg %p230
        %p434 = pneg %p227
        %s435 = sand.u32 %s217, 1
        %s436 = scalar_lea.sflag [#allocation5], %s435
        %s437 = sand.u32 %s217, 1
        %s438 = smul.addr %s437, 128
        %s439 = scalar_lea.vmem [#allocation12], %s438
        %s440 = smul.u32 16, %s34
        %s441 = smul.u32 16, %s34
        %s442 = smul.u32 2, %s35
        %s443 = smul.u32 32, %s35
        %s444 = smul.u32 16, %s34
        %p446 = scmp.eq.s32.totalorder %s35, 0
        // Predicated region
        $region69: #{tpu_custom_call.1} parent=47 // pred_check
          %p447 = pneg %p446
        $region70: #{tpu_custom_call.1} parent=47 // pred_check_branch
          %449 = sbr.rel (%p447) target = $region72
        $region71: #{tpu_custom_call.1} parent=47 // pred_region
          %450 = vst [vmem:[#allocation2] sm:$0xff] 0.0
          %451 = vst [vmem:[#allocation2 + $0x8] sm:$0xff] 0.0
          %452 = vst [vmem:[#allocation2 + $0x10] sm:$0xff] 0.0
          %453 = vst [vmem:[#allocation2 + $0x18] sm:$0xff] 0.0
          %454 = vst [vmem:[#allocation2 + $0x20] sm:$0xff] 0.0
          %455 = vst [vmem:[#allocation2 + $0x28] sm:$0xff] 0.0
          %456 = vst [vmem:[#allocation2 + $0x30] sm:$0xff] 0.0
          %457 = vst [vmem:[#allocation2 + $0x38] sm:$0xff] 0.0
          %458 = vst [vmem:[#allocation2 + $0x40] sm:$0xff] 0.0
          %459 = vst [vmem:[#allocation2 + $0x48] sm:$0xff] 0.0
          %460 = vst [vmem:[#allocation2 + $0x50] sm:$0xff] 0.0
          %461 = vst [vmem:[#allocation2 + $0x58] sm:$0xff] 0.0
          %462 = vst [vmem:[#allocation2 + $0x60] sm:$0xff] 0.0
          %463 = vst [vmem:[#allocation2 + $0x68] sm:$0xff] 0.0
          %464 = vst [vmem:[#allocation2 + $0x70] sm:$0xff] 0.0
          %465 = vst [vmem:[#allocation2 + $0x78] sm:$0xff] 0.0
        $region72: #{tpu_custom_call.1} parent=47 // pred_fallthru
          _
        %v466 = vld [vmem:[%s363] sm:$0xff]
        %v467 = vld [vmem:[%s363 + $0x8] sm:$0xff]
        %v468 = vld [vmem:[%s363 + $0x10] sm:$0xff]
        %v469 = vld [vmem:[%s363 + $0x18] sm:$0xff]
        %v470 = vld [vmem:[%s363 + $0x20] sm:$0xff]
        %v471 = vld [vmem:[%s363 + $0x28] sm:$0xff]
        %v472 = vld [vmem:[%s363 + $0x30] sm:$0xff]
        %v473 = vld [vmem:[%s363 + $0x38] sm:$0xff]
        %v474 = vld [vmem:[%s363 + $0x40] sm:$0xff]
        %v475 = vld [vmem:[%s363 + $0x48] sm:$0xff]
        %v476 = vld [vmem:[%s363 + $0x50] sm:$0xff]
        %v477 = vld [vmem:[%s363 + $0x58] sm:$0xff]
        %v478 = vld [vmem:[%s363 + $0x60] sm:$0xff]
        %v479 = vld [vmem:[%s363 + $0x68] sm:$0xff]
        %v480 = vld [vmem:[%s363 + $0x70] sm:$0xff]
        %v481 = vld [vmem:[%s363 + $0x78] sm:$0xff]
        %v482 = vld [vmem:[%s372] sm:$0xff]
        %v483 = vld [vmem:[%s372 + $0x8] sm:$0xff]
        %v484 = vld [vmem:[%s372 + $0x10] sm:$0xff]
        %v485 = vld [vmem:[%s372 + $0x18] sm:$0xff]
        %v486 = vld [vmem:[%s372 + $0x20] sm:$0xff]
        %v487 = vld [vmem:[%s372 + $0x28] sm:$0xff]
        %v488 = vld [vmem:[%s372 + $0x30] sm:$0xff]
        %v489 = vld [vmem:[%s372 + $0x38] sm:$0xff]
        %v490 = vld [vmem:[%s372 + $0x40] sm:$0xff]
        %v491 = vld [vmem:[%s372 + $0x48] sm:$0xff]
        %v492 = vld [vmem:[%s372 + $0x50] sm:$0xff]
        %v493 = vld [vmem:[%s372 + $0x58] sm:$0xff]
        %v494 = vld [vmem:[%s372 + $0x60] sm:$0xff]
        %v495 = vld [vmem:[%s372 + $0x68] sm:$0xff]
        %v496 = vld [vmem:[%s372 + $0x70] sm:$0xff]
        %v497 = vld [vmem:[%s372 + $0x78] sm:$0xff]
        %v498 = vld [vmem:[%s2] sm:$0x1]
        %v500 = vlaneseq
        %v501 = vshrl.u32 %v500, 7
        %v502 = vsub.s32 0, %v501
        %v503 = vrot.slane %v498, %v502
        %v505 = vmul.f32 %v466, %v503
        %v506 = vmul.f32 %v467, %v503
        %v507 = vmul.f32 %v468, %v503
        %v508 = vmul.f32 %v469, %v503
        %v509 = vmul.f32 %v470, %v503
        %v510 = vmul.f32 %v471, %v503
        %v511 = vmul.f32 %v472, %v503
        %v512 = vmul.f32 %v473, %v503
        %v513 = vmul.f32 %v474, %v503
        %v514 = vmul.f32 %v475, %v503
        %v515 = vmul.f32 %v476, %v503
        %v516 = vmul.f32 %v477, %v503
        %v517 = vmul.f32 %v478, %v503
        %v518 = vmul.f32 %v479, %v503
        %v519 = vmul.f32 %v480, %v503
        %v520 = vmul.f32 %v481, %v503
        %v521 = vsub.f32 1.0, %v498
        %v523 = vlaneseq
        %v524 = vshrl.u32 %v523, 7
        %v525 = vsub.s32 0, %v524
        %v526 = vrot.slane %v521, %v525
        %v528 = vmul.f32 %v482, %v526
        %v529 = vmul.f32 %v483, %v526
        %v530 = vmul.f32 %v484, %v526
        %v531 = vmul.f32 %v485, %v526
        %v532 = vmul.f32 %v486, %v526
        %v533 = vmul.f32 %v487, %v526
        %v534 = vmul.f32 %v488, %v526
        %v535 = vmul.f32 %v489, %v526
        %v536 = vmul.f32 %v490, %v526
        %v537 = vmul.f32 %v491, %v526
        %v538 = vmul.f32 %v492, %v526
        %v539 = vmul.f32 %v493, %v526
        %v540 = vmul.f32 %v494, %v526
        %v541 = vmul.f32 %v495, %v526
        %v542 = vmul.f32 %v496, %v526
        %v543 = vmul.f32 %v497, %v526
        %v544 = vadd.f32 %v505, %v528
        %v545 = vadd.f32 %v506, %v529
        %v546 = vadd.f32 %v507, %v530
        %v547 = vadd.f32 %v508, %v531
        %v548 = vadd.f32 %v509, %v532
        %v549 = vadd.f32 %v510, %v533
        %v550 = vadd.f32 %v511, %v534
        %v551 = vadd.f32 %v512, %v535
        %v552 = vadd.f32 %v513, %v536
        %v553 = vadd.f32 %v514, %v537
        %v554 = vadd.f32 %v515, %v538
        %v555 = vadd.f32 %v516, %v539
        %v556 = vadd.f32 %v517, %v540
        %v557 = vadd.f32 %v518, %v541
        %v558 = vadd.f32 %v519, %v542
        %v559 = vadd.f32 %v520, %v543
        %v560 = vpack.c.bf16 %v545, %v544
        %v561 = vpack.c.bf16 %v547, %v546
        %v562 = vpack.c.bf16 %v549, %v548
        %v563 = vpack.c.bf16 %v551, %v550
        %v564 = vpack.c.bf16 %v553, %v552
        %v565 = vpack.c.bf16 %v555, %v554
        %v566 = vpack.c.bf16 %v557, %v556
        %v567 = vpack.c.bf16 %v559, %v558
        %v568 = vld [vmem:[%s381] sm:$0xff]
        %v569 = vld [vmem:[%s381 + $0x8] sm:$0xff]
        %v570 = vld [vmem:[%s381 + $0x10] sm:$0xff]
        %v571 = vld [vmem:[%s381 + $0x18] sm:$0xff]
        %v572 = vld [vmem:[%s381 + $0x20] sm:$0xff]
        %v573 = vld [vmem:[%s381 + $0x28] sm:$0xff]
        %v574 = vld [vmem:[%s381 + $0x30] sm:$0xff]
        %v575 = vld [vmem:[%s381 + $0x38] sm:$0xff]
        %v576 = vld [vmem:[%s381 + $0x40] sm:$0xff]
        %v577 = vld [vmem:[%s381 + $0x48] sm:$0xff]
        %v578 = vld [vmem:[%s381 + $0x50] sm:$0xff]
        %v579 = vld [vmem:[%s381 + $0x58] sm:$0xff]
        %v580 = vld [vmem:[%s381 + $0x60] sm:$0xff]
        %v581 = vld [vmem:[%s381 + $0x68] sm:$0xff]
        %v582 = vld [vmem:[%s381 + $0x70] sm:$0xff]
        %v583 = vld [vmem:[%s381 + $0x78] sm:$0xff]
        %v600 = vunpack.c.l.b16 %v568
        %v601 = vunpack.c.h.b16 %v568
        %v602 = vunpack.c.l.b16 %v569
        %v603 = vunpack.c.h.b16 %v569
        %v604 = vunpack.c.l.b16 %v570
        %v605 = vunpack.c.h.b16 %v570
        %v606 = vunpack.c.l.b16 %v571
        %v607 = vunpack.c.h.b16 %v571
        %v608 = vunpack.c.l.b16 %v572
        %v609 = vunpack.c.h.b16 %v572
        %v610 = vunpack.c.l.b16 %v573
        %v611 = vunpack.c.h.b16 %v573
        %v612 = vunpack.c.l.b16 %v574
        %v613 = vunpack.c.h.b16 %v574
        %v614 = vunpack.c.l.b16 %v575
        %v615 = vunpack.c.h.b16 %v575
        %v616 = vunpack.c.l.b16 %v576
        %v617 = vunpack.c.h.b16 %v576
        %v618 = vunpack.c.l.b16 %v577
        %v619 = vunpack.c.h.b16 %v577
        %v620 = vunpack.c.l.b16 %v578
        %v621 = vunpack.c.h.b16 %v578
        %v622 = vunpack.c.l.b16 %v579
        %v623 = vunpack.c.h.b16 %v579
        %v624 = vunpack.c.l.b16 %v580
        %v625 = vunpack.c.h.b16 %v580
        %v626 = vunpack.c.l.b16 %v581
        %v627 = vunpack.c.h.b16 %v581
        %v628 = vunpack.c.l.b16 %v582
        %v629 = vunpack.c.h.b16 %v582
        %v630 = vunpack.c.l.b16 %v583
        %v631 = vunpack.c.h.b16 %v583
        %v632 = vpack.c.b16 %v602, %v600
        %v633 = vpack.c.b16 %v603, %v601
        %v634 = vpack.c.b16 %v606, %v604
        %v635 = vpack.c.b16 %v607, %v605
        %v636 = vpack.c.b16 %v610, %v608
        %v637 = vpack.c.b16 %v611, %v609
        %v638 = vpack.c.b16 %v614, %v612
        %v639 = vpack.c.b16 %v615, %v613
        %v640 = vpack.c.b16 %v618, %v616
        %v641 = vpack.c.b16 %v619, %v617
        %v642 = vpack.c.b16 %v622, %v620
        %v643 = vpack.c.b16 %v623, %v621
        %v644 = vpack.c.b16 %v626, %v624
        %v645 = vpack.c.b16 %v627, %v625
        %v646 = vpack.c.b16 %v630, %v628
        %v647 = vpack.c.b16 %v631, %v629
        %664 = vmatprep.subr.bf16.mxu0 %v647
        %665 = vmatpush1.bf16.msra.mxu0 %v646
        %666 = vmatprep.subr.bf16.mxu0 %v645
        %667 = vmatpush1.bf16.msra.mxu0 %v644
        %668 = vmatprep.subr.bf16.mxu0 %v643
        %669 = vmatpush1.bf16.msra.mxu0 %v642
        %670 = vmatprep.subr.bf16.mxu0 %v641
        %671 = vmatpush1.bf16.msra.mxu0 %v640
        %672 = vmatprep.subr.bf16.mxu0 %v639
        %673 = vmatpush1.bf16.msra.mxu0 %v638
        %674 = vmatprep.subr.bf16.mxu0 %v637
        %675 = vmatpush1.bf16.msra.mxu0 %v636
        %676 = vmatprep.subr.bf16.mxu0 %v635
        %677 = vmatpush1.bf16.msra.mxu0 %v634
        %678 = vmatprep.subr.bf16.mxu0 %v633
        %679 = vmatpush1.bf16.msra.mxu0 %v632
        %680 = vmatprep.subr.bf16.mxu0 0
        %681 = vmatpush2.bf16.msra.mxu0 0
        %682 = vmatprep.subr.bf16.mxu0 0
        %683 = vmatpush2.bf16.msra.mxu0 0
        %684 = vmatprep.subr.bf16.mxu0 0
        %685 = vmatpush2.bf16.msra.mxu0 0
        %686 = vmatprep.subr.bf16.mxu0 0
        %687 = vmatpush2.bf16.msra.mxu0 0
        %688 = vmatprep.subr.bf16.mxu0 0
        %689 = vmatpush2.bf16.msra.mxu0 0
        %690 = vmatprep.subr.bf16.mxu0 0
        %691 = vmatpush2.bf16.msra.mxu0 0
        %692 = vmatprep.subr.bf16.mxu0 0
        %693 = vmatpush2.bf16.msra.mxu0 0
        %694 = vmatprep.subr.bf16.mxu0 0
        %695 = vmatpush2.bf16.msra.mxu0 0
        %696 = vmatprep.mubr.bf16.mxu0 0
        %697 = vmatmul.mubr.bf16.gmra.mxu0 %v560
        %v698 = vpop.f32.mrf.mxu0
        %v699 = vadd.f32 0.0, %v698
        %v700 = vpop.f32.mrf.mxu0
        %v701 = vadd.f32 0.0, %v700
        %v702 = vpop.f32.mrf.mxu0
        %v703 = vadd.f32 0.0, %v702
        %v704 = vpop.f32.mrf.mxu0
        %v705 = vadd.f32 0.0, %v704
        %706 = vmatprep.mubr.bf16.mxu0 0
        %707 = vmatmul.mubr.bf16.gmra.mxu0 %v561
        %v708 = vpop.f32.mrf.mxu0
        %v709 = vadd.f32 0.0, %v708
        %v710 = vpop.f32.mrf.mxu0
        %v711 = vadd.f32 0.0, %v710
        %v712 = vpop.f32.mrf.mxu0
        %v713 = vadd.f32 0.0, %v712
        %v714 = vpop.f32.mrf.mxu0
        %v715 = vadd.f32 0.0, %v714
        %716 = vmatprep.mubr.bf16.mxu0 0
        %717 = vmatmul.mubr.bf16.gmra.mxu0 %v562
        %v718 = vpop.f32.mrf.mxu0
        %v719 = vadd.f32 0.0, %v718
        %v720 = vpop.f32.mrf.mxu0
        %v721 = vadd.f32 0.0, %v720
        %v722 = vpop.f32.mrf.mxu0
        %v723 = vadd.f32 0.0, %v722
        %v724 = vpop.f32.mrf.mxu0
        %v725 = vadd.f32 0.0, %v724
        %726 = vmatprep.mubr.bf16.mxu0 0
        %727 = vmatmul.mubr.bf16.gmra.mxu0 %v563
        %v728 = vpop.f32.mrf.mxu0
        %v729 = vadd.f32 0.0, %v728
        %v730 = vpop.f32.mrf.mxu0
        %v731 = vadd.f32 0.0, %v730
        %v732 = vpop.f32.mrf.mxu0
        %v733 = vadd.f32 0.0, %v732
        %v734 = vpop.f32.mrf.mxu0
        %v735 = vadd.f32 0.0, %v734
        %736 = vmatprep.mubr.bf16.mxu0 0
        %737 = vmatmul.mubr.bf16.gmra.mxu0 %v564
        %v738 = vpop.f32.mrf.mxu0
        %v739 = vadd.f32 0.0, %v738
        %v740 = vpop.f32.mrf.mxu0
        %v741 = vadd.f32 0.0, %v740
        %v742 = vpop.f32.mrf.mxu0
        %v743 = vadd.f32 0.0, %v742
        %v744 = vpop.f32.mrf.mxu0
        %v745 = vadd.f32 0.0, %v744
        %746 = vmatprep.mubr.bf16.mxu0 0
        %747 = vmatmul.mubr.bf16.gmra.mxu0 %v565
        %v748 = vpop.f32.mrf.mxu0
        %v749 = vadd.f32 0.0, %v748
        %v750 = vpop.f32.mrf.mxu0
        %v751 = vadd.f32 0.0, %v750
        %v752 = vpop.f32.mrf.mxu0
        %v753 = vadd.f32 0.0, %v752
        %v754 = vpop.f32.mrf.mxu0
        %v755 = vadd.f32 0.0, %v754
        %756 = vmatprep.mubr.bf16.mxu0 0
        %757 = vmatmul.mubr.bf16.gmra.mxu0 %v566
        %v758 = vpop.f32.mrf.mxu0
        %v759 = vadd.f32 0.0, %v758
        %v760 = vpop.f32.mrf.mxu0
        %v761 = vadd.f32 0.0, %v760
        %v762 = vpop.f32.mrf.mxu0
        %v763 = vadd.f32 0.0, %v762
        %v764 = vpop.f32.mrf.mxu0
        %v765 = vadd.f32 0.0, %v764
        %766 = vmatprep.mubr.bf16.mxu0 0
        %767 = vmatmul.mubr.bf16.gmra.mxu0 %v567
        %v768 = vpop.f32.mrf.mxu0
        %v769 = vadd.f32 0.0, %v768
        %v770 = vpop.f32.mrf.mxu0
        %v771 = vadd.f32 0.0, %v770
        %v772 = vpop.f32.mrf.mxu0
        %v773 = vadd.f32 0.0, %v772
        %v774 = vpop.f32.mrf.mxu0
        %v775 = vadd.f32 0.0, %v774
        %776 = vdwg.mxu0
        %v777 = vmax.f32 %v699, 0.0
        %v778 = vmax.f32 %v701, 0.0
        %v779 = vmax.f32 %v703, 0.0
        %v780 = vmax.f32 %v705, 0.0
        %v781 = vmax.f32 %v709, 0.0
        %v782 = vmax.f32 %v711, 0.0
        %v783 = vmax.f32 %v713, 0.0
        %v784 = vmax.f32 %v715, 0.0
        %v785 = vmax.f32 %v719, 0.0
        %v786 = vmax.f32 %v721, 0.0
        %v787 = vmax.f32 %v723, 0.0
        %v788 = vmax.f32 %v725, 0.0
        %v789 = vmax.f32 %v729, 0.0
        %v790 = vmax.f32 %v731, 0.0
        %v791 = vmax.f32 %v733, 0.0
        %v792 = vmax.f32 %v735, 0.0
        %v793 = vmax.f32 %v739, 0.0
        %v794 = vmax.f32 %v741, 0.0
        %v795 = vmax.f32 %v743, 0.0
        %v796 = vmax.f32 %v745, 0.0
        %v797 = vmax.f32 %v749, 0.0
        %v798 = vmax.f32 %v751, 0.0
        %v799 = vmax.f32 %v753, 0.0
        %v800 = vmax.f32 %v755, 0.0
        %v801 = vmax.f32 %v759, 0.0
        %v802 = vmax.f32 %v761, 0.0
        %v803 = vmax.f32 %v763, 0.0
        %v804 = vmax.f32 %v765, 0.0
        %v805 = vmax.f32 %v769, 0.0
        %v806 = vmax.f32 %v771, 0.0
        %v807 = vmax.f32 %v773, 0.0
        %v808 = vmax.f32 %v775, 0.0
        %v809 = vmul.f32 %v777, %v777
        %v810 = vmul.f32 %v778, %v778
        %v811 = vmul.f32 %v779, %v779
        %v812 = vmul.f32 %v780, %v780
        %v813 = vmul.f32 %v781, %v781
        %v814 = vmul.f32 %v782, %v782
        %v815 = vmul.f32 %v783, %v783
        %v816 = vmul.f32 %v784, %v784
        %v817 = vmul.f32 %v785, %v785
        %v818 = vmul.f32 %v786, %v786
        %v819 = vmul.f32 %v787, %v787
        %v820 = vmul.f32 %v788, %v788
        %v821 = vmul.f32 %v789, %v789
        %v822 = vmul.f32 %v790, %v790
        %v823 = vmul.f32 %v791, %v791
        %v824 = vmul.f32 %v792, %v792
        %v825 = vmul.f32 %v793, %v793
        %v826 = vmul.f32 %v794, %v794
        %v827 = vmul.f32 %v795, %v795
        %v828 = vmul.f32 %v796, %v796
        %v829 = vmul.f32 %v797, %v797
        %v830 = vmul.f32 %v798, %v798
        %v831 = vmul.f32 %v799, %v799
        %v832 = vmul.f32 %v800, %v800
        %v833 = vmul.f32 %v801, %v801
        %v834 = vmul.f32 %v802, %v802
        %v835 = vmul.f32 %v803, %v803
        %v836 = vmul.f32 %v804, %v804
        %v837 = vmul.f32 %v805, %v805
        %v838 = vmul.f32 %v806, %v806
        %v839 = vmul.f32 %v807, %v807
        %v840 = vmul.f32 %v808, %v808
        %v841 = vld [vmem:[#allocation2] sm:$0xff]
        %v842 = vld [vmem:[#allocation2 + $0x8] sm:$0xff]
        %v843 = vld [vmem:[#allocation2 + $0x10] sm:$0xff]
        %v844 = vld [vmem:[#allocation2 + $0x18] sm:$0xff]
        %v845 = vld [vmem:[#allocation2 + $0x20] sm:$0xff]
        %v846 = vld [vmem:[#allocation2 + $0x28] sm:$0xff]
        %v847 = vld [vmem:[#allocation2 + $0x30] sm:$0xff]
        %v848 = vld [vmem:[#allocation2 + $0x38] sm:$0xff]
        %v849 = vld [vmem:[#allocation2 + $0x40] sm:$0xff]
        %v850 = vld [vmem:[#allocation2 + $0x48] sm:$0xff]
        %v851 = vld [vmem:[#allocation2 + $0x50] sm:$0xff]
        %v852 = vld [vmem:[#allocation2 + $0x58] sm:$0xff]
        %v853 = vld [vmem:[#allocation2 + $0x60] sm:$0xff]
        %v854 = vld [vmem:[#allocation2 + $0x68] sm:$0xff]
        %v855 = vld [vmem:[#allocation2 + $0x70] sm:$0xff]
        %v856 = vld [vmem:[#allocation2 + $0x78] sm:$0xff]
        %v857 = vpack.c.bf16 %v811, %v809
        %v858 = vpack.c.bf16 %v812, %v810
        %v859 = vpack.c.bf16 %v815, %v813
        %v860 = vpack.c.bf16 %v816, %v814
        %v861 = vpack.c.bf16 %v819, %v817
        %v862 = vpack.c.bf16 %v820, %v818
        %v863 = vpack.c.bf16 %v823, %v821
        %v864 = vpack.c.bf16 %v824, %v822
        %v865 = vpack.c.bf16 %v827, %v825
        %v866 = vpack.c.bf16 %v828, %v826
        %v867 = vpack.c.bf16 %v831, %v829
        %v868 = vpack.c.bf16 %v832, %v830
        %v869 = vpack.c.bf16 %v835, %v833
        %v870 = vpack.c.bf16 %v836, %v834
        %v871 = vpack.c.bf16 %v839, %v837
        %v872 = vpack.c.bf16 %v840, %v838
        %v873 = vld [vmem:[%s390] sm:$0xf]
        %v874 = vld [vmem:[%s390 + $0x4] sm:$0xf]
        %v875 = vld [vmem:[%s390 + $0x8] sm:$0xf]
        %v876 = vld [vmem:[%s390 + $0xc] sm:$0xf]
        %v877 = vld [vmem:[%s390 + $0x10] sm:$0xf]
        %v878 = vld [vmem:[%s390 + $0x14] sm:$0xf]
        %v879 = vld [vmem:[%s390 + $0x18] sm:$0xf]
        %v880 = vld [vmem:[%s390 + $0x1c] sm:$0xf]
        %v881 = vld [vmem:[%s390 + $0x20] sm:$0xf]
        %v882 = vld [vmem:[%s390 + $0x24] sm:$0xf]
        %v883 = vld [vmem:[%s390 + $0x28] sm:$0xf]
        %v884 = vld [vmem:[%s390 + $0x2c] sm:$0xf]
        %v885 = vld [vmem:[%s390 + $0x30] sm:$0xf]
        %v886 = vld [vmem:[%s390 + $0x34] sm:$0xf]
        %v887 = vld [vmem:[%s390 + $0x38] sm:$0xf]
        %v888 = vld [vmem:[%s390 + $0x3c] sm:$0xf]
        %v889 = vld [vmem:[%s390 + $0x40] sm:$0xf]
        %v890 = vld [vmem:[%s390 + $0x44] sm:$0xf]
        %v891 = vld [vmem:[%s390 + $0x48] sm:$0xf]
        %v892 = vld [vmem:[%s390 + $0x4c] sm:$0xf]
        %v893 = vld [vmem:[%s390 + $0x50] sm:$0xf]
        %v894 = vld [vmem:[%s390 + $0x54] sm:$0xf]
        %v895 = vld [vmem:[%s390 + $0x58] sm:$0xf]
        %v896 = vld [vmem:[%s390 + $0x5c] sm:$0xf]
        %v897 = vld [vmem:[%s390 + $0x60] sm:$0xf]
        %v898 = vld [vmem:[%s390 + $0x64] sm:$0xf]
        %v899 = vld [vmem:[%s390 + $0x68] sm:$0xf]
        %v900 = vld [vmem:[%s390 + $0x6c] sm:$0xf]
        %v901 = vld [vmem:[%s390 + $0x70] sm:$0xf]
        %v902 = vld [vmem:[%s390 + $0x74] sm:$0xf]
        %v903 = vld [vmem:[%s390 + $0x78] sm:$0xf]
        %v904 = vld [vmem:[%s390 + $0x7c] sm:$0xf]
        %v937 = vunpack.c.l.b16 %v873
        %v938 = vunpack.c.l.b16 %v874
        %v939 = vunpack.c.l.b16 %v875
        %v940 = vunpack.c.l.b16 %v876
        %v941 = vunpack.c.l.b16 %v877
        %v942 = vunpack.c.l.b16 %v878
        %v943 = vunpack.c.l.b16 %v879
        %v944 = vunpack.c.l.b16 %v880
        %v945 = vunpack.c.l.b16 %v881
        %v946 = vunpack.c.l.b16 %v882
        %v947 = vunpack.c.l.b16 %v883
        %v948 = vunpack.c.l.b16 %v884
        %v949 = vunpack.c.l.b16 %v885
        %v950 = vunpack.c.l.b16 %v886
        %v951 = vunpack.c.l.b16 %v887
        %v952 = vunpack.c.l.b16 %v888
        %v953 = vunpack.c.l.b16 %v889
        %v954 = vunpack.c.l.b16 %v890
        %v955 = vunpack.c.l.b16 %v891
        %v956 = vunpack.c.l.b16 %v892
        %v957 = vunpack.c.l.b16 %v893
        %v958 = vunpack.c.l.b16 %v894
        %v959 = vunpack.c.l.b16 %v895
        %v960 = vunpack.c.l.b16 %v896
        %v961 = vunpack.c.l.b16 %v897
        %v962 = vunpack.c.l.b16 %v898
        %v963 = vunpack.c.l.b16 %v899
        %v964 = vunpack.c.l.b16 %v900
        %v965 = vunpack.c.l.b16 %v901
        %v966 = vunpack.c.l.b16 %v902
        %v967 = vunpack.c.l.b16 %v903
        %v968 = vunpack.c.l.b16 %v904
        %v969 = vpack.c.b16 %v938, %v937
        %v970 = vpack.c.b16 %v940, %v939
        %v971 = vpack.c.b16 %v942, %v941
        %v972 = vpack.c.b16 %v944, %v943
        %v973 = vpack.c.b16 %v946, %v945
        %v974 = vpack.c.b16 %v948, %v947
        %v975 = vpack.c.b16 %v950, %v949
        %v976 = vpack.c.b16 %v952, %v951
        %v977 = vpack.c.b16 %v954, %v953
        %v978 = vpack.c.b16 %v956, %v955
        %v979 = vpack.c.b16 %v958, %v957
        %v980 = vpack.c.b16 %v960, %v959
        %v981 = vpack.c.b16 %v962, %v961
        %v982 = vpack.c.b16 %v964, %v963
        %v983 = vpack.c.b16 %v966, %v965
        %v984 = vpack.c.b16 %v968, %v967
        %1001 = vmatprep.subr.bf16.mxu0 0
        %1002 = vmatpush1.bf16.msra.mxu0 %v976
        %1003 = vmatprep.subr.bf16.mxu0 0
        %1004 = vmatpush1.bf16.msra.mxu0 %v975
        %1005 = vmatprep.subr.bf16.mxu0 0
        %1006 = vmatpush1.bf16.msra.mxu0 %v974
        %1007 = vmatprep.subr.bf16.mxu0 0
        %1008 = vmatpush1.bf16.msra.mxu0 %v973
        %1009 = vmatprep.subr.bf16.mxu0 0
        %1010 = vmatpush1.bf16.msra.mxu0 %v972
        %1011 = vmatprep.subr.bf16.mxu0 0
        %1012 = vmatpush1.bf16.msra.mxu0 %v971
        %1013 = vmatprep.subr.bf16.mxu0 0
        %1014 = vmatpush1.bf16.msra.mxu0 %v970
        %1015 = vmatprep.subr.bf16.mxu0 0
        %1016 = vmatpush1.bf16.msra.mxu0 %v969
        %1017 = vmatprep.subr.bf16.mxu0 0
        %1018 = vmatpush2.bf16.msra.mxu0 %v984
        %1019 = vmatprep.subr.bf16.mxu0 0
        %1020 = vmatpush2.bf16.msra.mxu0 %v983
        %1021 = vmatprep.subr.bf16.mxu0 0
        %1022 = vmatpush2.bf16.msra.mxu0 %v982
        %1023 = vmatprep.subr.bf16.mxu0 0
        %1024 = vmatpush2.bf16.msra.mxu0 %v981
        %1025 = vmatprep.subr.bf16.mxu0 0
        %1026 = vmatpush2.bf16.msra.mxu0 %v980
        %1027 = vmatprep.subr.bf16.mxu0 0
        %1028 = vmatpush2.bf16.msra.mxu0 %v979
        %1029 = vmatprep.subr.bf16.mxu0 0
        %1030 = vmatpush2.bf16.msra.mxu0 %v978
        %1031 = vmatprep.subr.bf16.mxu0 0
        %1032 = vmatpush2.bf16.msra.mxu0 %v977
        %1033 = vmatprep.mubr.bf16.mxu0 %v858
        %1034 = vmatmul.mubr.bf16.gmra.mxu0 %v857
        %v1035 = vpop.f32.mrf.mxu0
        %v1036 = vadd.f32 0.0, %v1035
        %v1037 = vpop.f32.mrf.mxu0
        %v1038 = vpop.f32.mrf.mxu0
        %v1039 = vadd.f32 0.0, %v1038
        %v1040 = vpop.f32.mrf.mxu0
        %1041 = vmatprep.mubr.bf16.mxu0 %v860
        %1042 = vmatmul.mubr.bf16.gmra.mxu0 %v859
        %v1043 = vpop.f32.mrf.mxu0
        %v1044 = vadd.f32 0.0, %v1043
        %v1045 = vpop.f32.mrf.mxu0
        %v1046 = vpop.f32.mrf.mxu0
        %v1047 = vadd.f32 0.0, %v1046
        %v1048 = vpop.f32.mrf.mxu0
        %1049 = vmatprep.mubr.bf16.mxu0 %v862
        %1050 = vmatmul.mubr.bf16.gmra.mxu0 %v861
        %v1051 = vpop.f32.mrf.mxu0
        %v1052 = vadd.f32 0.0, %v1051
        %v1053 = vpop.f32.mrf.mxu0
        %v1054 = vpop.f32.mrf.mxu0
        %v1055 = vadd.f32 0.0, %v1054
        %v1056 = vpop.f32.mrf.mxu0
        %1057 = vmatprep.mubr.bf16.mxu0 %v864
        %1058 = vmatmul.mubr.bf16.gmra.mxu0 %v863
        %v1059 = vpop.f32.mrf.mxu0
        %v1060 = vadd.f32 0.0, %v1059
        %v1061 = vpop.f32.mrf.mxu0
        %v1062 = vpop.f32.mrf.mxu0
        %v1063 = vadd.f32 0.0, %v1062
        %v1064 = vpop.f32.mrf.mxu0
        %1065 = vmatprep.mubr.bf16.mxu0 %v866
        %1066 = vmatmul.mubr.bf16.gmra.mxu0 %v865
        %v1067 = vpop.f32.mrf.mxu0
        %v1068 = vadd.f32 0.0, %v1067
        %v1069 = vpop.f32.mrf.mxu0
        %v1070 = vpop.f32.mrf.mxu0
        %v1071 = vadd.f32 0.0, %v1070
        %v1072 = vpop.f32.mrf.mxu0
        %1073 = vmatprep.mubr.bf16.mxu0 %v868
        %1074 = vmatmul.mubr.bf16.gmra.mxu0 %v867
        %v1075 = vpop.f32.mrf.mxu0
        %v1076 = vadd.f32 0.0, %v1075
        %v1077 = vpop.f32.mrf.mxu0
        %v1078 = vpop.f32.mrf.mxu0
        %v1079 = vadd.f32 0.0, %v1078
        %v1080 = vpop.f32.mrf.mxu0
        %1081 = vmatprep.mubr.bf16.mxu0 %v870
        %1082 = vmatmul.mubr.bf16.gmra.mxu0 %v869
        %v1083 = vpop.f32.mrf.mxu0
        %v1084 = vadd.f32 0.0, %v1083
        %v1085 = vpop.f32.mrf.mxu0
        %v1086 = vpop.f32.mrf.mxu0
        %v1087 = vadd.f32 0.0, %v1086
        %v1088 = vpop.f32.mrf.mxu0
        %1089 = vmatprep.mubr.bf16.mxu0 %v872
        %1090 = vmatmul.mubr.bf16.gmra.mxu0 %v871
        %v1091 = vpop.f32.mrf.mxu0
        %v1092 = vadd.f32 0.0, %v1091
        %v1093 = vpop.f32.mrf.mxu0
        %v1094 = vpop.f32.mrf.mxu0
        %v1095 = vadd.f32 0.0, %v1094
        %v1096 = vpop.f32.mrf.mxu0
        %1097 = vdwg.mxu0
        %v1098 = vadd.f32 %v841, %v1036
        %v1099 = vadd.f32 %v842, %v1039
        %v1100 = vadd.f32 %v843, %v1044
        %v1101 = vadd.f32 %v844, %v1047
        %v1102 = vadd.f32 %v845, %v1052
        %v1103 = vadd.f32 %v846, %v1055
        %v1104 = vadd.f32 %v847, %v1060
        %v1105 = vadd.f32 %v848, %v1063
        %v1106 = vadd.f32 %v849, %v1068
        %v1107 = vadd.f32 %v850, %v1071
        %v1108 = vadd.f32 %v851, %v1076
        %v1109 = vadd.f32 %v852, %v1079
        %v1110 = vadd.f32 %v853, %v1084
        %v1111 = vadd.f32 %v854, %v1087
        %v1112 = vadd.f32 %v855, %v1092
        %v1113 = vadd.f32 %v856, %v1095
        %1114 = vst [vmem:[#allocation2] sm:$0xff] %v1098
        %1115 = vst [vmem:[#allocation2 + $0x8] sm:$0xff] %v1099
        %1116 = vst [vmem:[#allocation2 + $0x10] sm:$0xff] %v1100
        %1117 = vst [vmem:[#allocation2 + $0x18] sm:$0xff] %v1101
        %1118 = vst [vmem:[#allocation2 + $0x20] sm:$0xff] %v1102
        %1119 = vst [vmem:[#allocation2 + $0x28] sm:$0xff] %v1103
        %1120 = vst [vmem:[#allocation2 + $0x30] sm:$0xff] %v1104
        %1121 = vst [vmem:[#allocation2 + $0x38] sm:$0xff] %v1105
        %1122 = vst [vmem:[#allocation2 + $0x40] sm:$0xff] %v1106
        %1123 = vst [vmem:[#allocation2 + $0x48] sm:$0xff] %v1107
        %1124 = vst [vmem:[#allocation2 + $0x50] sm:$0xff] %v1108
        %1125 = vst [vmem:[#allocation2 + $0x58] sm:$0xff] %v1109
        %1126 = vst [vmem:[#allocation2 + $0x60] sm:$0xff] %v1110
        %1127 = vst [vmem:[#allocation2 + $0x68] sm:$0xff] %v1111
        %1128 = vst [vmem:[#allocation2 + $0x70] sm:$0xff] %v1112
        %1129 = vst [vmem:[#allocation2 + $0x78] sm:$0xff] %v1113
        %p1130 = scmp.eq.s32.totalorder %s35, 1
        // Predicated region
        $region73: #{tpu_custom_call.1} parent=47 // pred_check
          %p1131 = pneg %p1130
        $region74: #{tpu_custom_call.1} parent=47 // pred_check_branch
          %1133 = sbr.rel (%p1131) target = $region76
        $region75: #{tpu_custom_call.1} parent=47 // pred_region
          %v1134 = vld [vmem:[%s3] sm:$0x1]
          %v1136 = vlaneseq
          %v1137 = vshrl.u32 %v1136, 7
          %v1138 = vsub.s32 0, %v1137
          %v1139 = vrot.slane %v1134, %v1138
          %v1141 = vmul.f32 %v466, %v1139
          %v1142 = vmul.f32 %v467, %v1139
          %v1143 = vmul.f32 %v468, %v1139
          %v1144 = vmul.f32 %v469, %v1139
          %v1145 = vmul.f32 %v470, %v1139
          %v1146 = vmul.f32 %v471, %v1139
          %v1147 = vmul.f32 %v472, %v1139
          %v1148 = vmul.f32 %v473, %v1139
          %v1149 = vmul.f32 %v474, %v1139
          %v1150 = vmul.f32 %v475, %v1139
          %v1151 = vmul.f32 %v476, %v1139
          %v1152 = vmul.f32 %v477, %v1139
          %v1153 = vmul.f32 %v478, %v1139
          %v1154 = vmul.f32 %v479, %v1139
          %v1155 = vmul.f32 %v480, %v1139
          %v1156 = vmul.f32 %v481, %v1139
          %v1157 = vsub.f32 1.0, %v1134
          %v1159 = vlaneseq
          %v1160 = vshrl.u32 %v1159, 7
          %v1161 = vsub.s32 0, %v1160
          %v1162 = vrot.slane %v1157, %v1161
          %v1164 = vmul.f32 %v482, %v1162
          %v1165 = vmul.f32 %v483, %v1162
          %v1166 = vmul.f32 %v484, %v1162
          %v1167 = vmul.f32 %v485, %v1162
          %v1168 = vmul.f32 %v486, %v1162
          %v1169 = vmul.f32 %v487, %v1162
          %v1170 = vmul.f32 %v488, %v1162
          %v1171 = vmul.f32 %v489, %v1162
          %v1172 = vmul.f32 %v490, %v1162
          %v1173 = vmul.f32 %v491, %v1162
          %v1174 = vmul.f32 %v492, %v1162
          %v1175 = vmul.f32 %v493, %v1162
          %v1176 = vmul.f32 %v494, %v1162
          %v1177 = vmul.f32 %v495, %v1162
          %v1178 = vmul.f32 %v496, %v1162
          %v1179 = vmul.f32 %v497, %v1162
          %v1180 = vadd.f32 %v1141, %v1164
          %v1181 = vadd.f32 %v1142, %v1165
          %v1182 = vadd.f32 %v1143, %v1166
          %v1183 = vadd.f32 %v1144, %v1167
          %v1184 = vadd.f32 %v1145, %v1168
          %v1185 = vadd.f32 %v1146, %v1169
          %v1186 = vadd.f32 %v1147, %v1170
          %v1187 = vadd.f32 %v1148, %v1171
          %v1188 = vadd.f32 %v1149, %v1172
          %v1189 = vadd.f32 %v1150, %v1173
          %v1190 = vadd.f32 %v1151, %v1174
          %v1191 = vadd.f32 %v1152, %v1175
          %v1192 = vadd.f32 %v1153, %v1176
          %v1193 = vadd.f32 %v1154, %v1177
          %v1194 = vadd.f32 %v1155, %v1178
          %v1195 = vadd.f32 %v1156, %v1179
          %v1196 = vpack.c.bf16 %v1181, %v1180
          %v1197 = vpack.c.bf16 %v1183, %v1182
          %v1198 = vpack.c.bf16 %v1185, %v1184
          %v1199 = vpack.c.bf16 %v1187, %v1186
          %v1200 = vpack.c.bf16 %v1189, %v1188
          %v1201 = vpack.c.bf16 %v1191, %v1190
          %v1202 = vpack.c.bf16 %v1193, %v1192
          %v1203 = vpack.c.bf16 %v1195, %v1194
          %v1204 = vld [vmem:[#allocation11] sm:$0xf]
          %v1205 = vld [vmem:[#allocation11 + $0x4] sm:$0xf]
          %v1206 = vld [vmem:[#allocation11 + $0x8] sm:$0xf]
          %v1207 = vld [vmem:[#allocation11 + $0xc] sm:$0xf]
          %v1208 = vld [vmem:[#allocation11 + $0x10] sm:$0xf]
          %v1209 = vld [vmem:[#allocation11 + $0x14] sm:$0xf]
          %v1210 = vld [vmem:[#allocation11 + $0x18] sm:$0xf]
          %v1211 = vld [vmem:[#allocation11 + $0x1c] sm:$0xf]
          %v1212 = vld [vmem:[#allocation11 + $0x20] sm:$0xf]
          %v1213 = vld [vmem:[#allocation11 + $0x24] sm:$0xf]
          %v1214 = vld [vmem:[#allocation11 + $0x28] sm:$0xf]
          %v1215 = vld [vmem:[#allocation11 + $0x2c] sm:$0xf]
          %v1216 = vld [vmem:[#allocation11 + $0x30] sm:$0xf]
          %v1217 = vld [vmem:[#allocation11 + $0x34] sm:$0xf]
          %v1218 = vld [vmem:[#allocation11 + $0x38] sm:$0xf]
          %v1219 = vld [vmem:[#allocation11 + $0x3c] sm:$0xf]
          %v1236 = vunpack.c.l.b16 %v1204
          %v1237 = vunpack.c.l.b16 %v1205
          %v1238 = vunpack.c.l.b16 %v1206
          %v1239 = vunpack.c.l.b16 %v1207
          %v1240 = vunpack.c.l.b16 %v1208
          %v1241 = vunpack.c.l.b16 %v1209
          %v1242 = vunpack.c.l.b16 %v1210
          %v1243 = vunpack.c.l.b16 %v1211
          %v1244 = vunpack.c.l.b16 %v1212
          %v1245 = vunpack.c.l.b16 %v1213
          %v1246 = vunpack.c.l.b16 %v1214
          %v1247 = vunpack.c.l.b16 %v1215
          %v1248 = vunpack.c.l.b16 %v1216
          %v1249 = vunpack.c.l.b16 %v1217
          %v1250 = vunpack.c.l.b16 %v1218
          %v1251 = vunpack.c.l.b16 %v1219
          %v1252 = vpack.c.b16 %v1237, %v1236
          %v1253 = vpack.c.b16 %v1239, %v1238
          %v1254 = vpack.c.b16 %v1241, %v1240
          %v1255 = vpack.c.b16 %v1243, %v1242
          %v1256 = vpack.c.b16 %v1245, %v1244
          %v1257 = vpack.c.b16 %v1247, %v1246
          %v1258 = vpack.c.b16 %v1249, %v1248
          %v1259 = vpack.c.b16 %v1251, %v1250
          %1268 = vmatprep.subr.bf16.mxu0 0
          %1269 = vmatpush1.bf16.msra.mxu0 %v1259
          %1270 = vmatprep.subr.bf16.mxu0 0
          %1271 = vmatpush1.bf16.msra.mxu0 %v1258
          %1272 = vmatprep.subr.bf16.mxu0 0
          %1273 = vmatpush1.bf16.msra.mxu0 %v1257
          %1274 = vmatprep.subr.bf16.mxu0 0
          %1275 = vmatpush1.bf16.msra.mxu0 %v1256
          %1276 = vmatprep.subr.bf16.mxu0 0
          %1277 = vmatpush1.bf16.msra.mxu0 %v1255
          %1278 = vmatprep.subr.bf16.mxu0 0
          %1279 = vmatpush1.bf16.msra.mxu0 %v1254
          %1280 = vmatprep.subr.bf16.mxu0 0
          %1281 = vmatpush1.bf16.msra.mxu0 %v1253
          %1282 = vmatprep.subr.bf16.mxu0 0
          %1283 = vmatpush1.bf16.msra.mxu0 %v1252
          %1284 = vmatprep.subr.bf16.mxu0 0
          %1285 = vmatpush2.bf16.msra.mxu0 0
          %1286 = vmatprep.subr.bf16.mxu0 0
          %1287 = vmatpush2.bf16.msra.mxu0 0
          %1288 = vmatprep.subr.bf16.mxu0 0
          %1289 = vmatpush2.bf16.msra.mxu0 0
          %1290 = vmatprep.subr.bf16.mxu0 0
          %1291 = vmatpush2.bf16.msra.mxu0 0
          %1292 = vmatprep.subr.bf16.mxu0 0
          %1293 = vmatpush2.bf16.msra.mxu0 0
          %1294 = vmatprep.subr.bf16.mxu0 0
          %1295 = vmatpush2.bf16.msra.mxu0 0
          %1296 = vmatprep.subr.bf16.mxu0 0
          %1297 = vmatpush2.bf16.msra.mxu0 0
          %1298 = vmatprep.subr.bf16.mxu0 0
          %1299 = vmatpush2.bf16.msra.mxu0 0
          %1300 = vmatprep.mubr.bf16.mxu0 0
          %1301 = vmatmul.mubr.bf16.gmra.mxu0 %v1196
          %v1302 = vpop.f32.mrf.mxu0
          %v1303 = vadd.f32 0.0, %v1302
          %v1304 = vpop.f32.mrf.mxu0
          %v1305 = vpop.f32.mrf.mxu0
          %v1306 = vadd.f32 0.0, %v1305
          %v1307 = vpop.f32.mrf.mxu0
          %1308 = vmatprep.mubr.bf16.mxu0 0
          %1309 = vmatmul.mubr.bf16.gmra.mxu0 %v1197
          %v1310 = vpop.f32.mrf.mxu0
          %v1311 = vadd.f32 0.0, %v1310
          %v1312 = vpop.f32.mrf.mxu0
          %v1313 = vpop.f32.mrf.mxu0
          %v1314 = vadd.f32 0.0, %v1313
          %v1315 = vpop.f32.mrf.mxu0
          %1316 = vmatprep.mubr.bf16.mxu0 0
          %1317 = vmatmul.mubr.bf16.gmra.mxu0 %v1198
          %v1318 = vpop.f32.mrf.mxu0
          %v1319 = vadd.f32 0.0, %v1318
          %v1320 = vpop.f32.mrf.mxu0
          %v1321 = vpop.f32.mrf.mxu0
          %v1322 = vadd.f32 0.0, %v1321
          %v1323 = vpop.f32.mrf.mxu0
          %1324 = vmatprep.mubr.bf16.mxu0 0
          %1325 = vmatmul.mubr.bf16.gmra.mxu0 %v1199
          %v1326 = vpop.f32.mrf.mxu0
          %v1327 = vadd.f32 0.0, %v1326
          %v1328 = vpop.f32.mrf.mxu0
          %v1329 = vpop.f32.mrf.mxu0
          %v1330 = vadd.f32 0.0, %v1329
          %v1331 = vpop.f32.mrf.mxu0
          %1332 = vmatprep.mubr.bf16.mxu0 0
          %1333 = vmatmul.mubr.bf16.gmra.mxu0 %v1200
          %v1334 = vpop.f32.mrf.mxu0
          %v1335 = vadd.f32 0.0, %v1334
          %v1336 = vpop.f32.mrf.mxu0
          %v1337 = vpop.f32.mrf.mxu0
          %v1338 = vadd.f32 0.0, %v1337
          %v1339 = vpop.f32.mrf.mxu0
          %1340 = vmatprep.mubr.bf16.mxu0 0
          %1341 = vmatmul.mubr.bf16.gmra.mxu0 %v1201
          %v1342 = vpop.f32.mrf.mxu0
          %v1343 = vadd.f32 0.0, %v1342
          %v1344 = vpop.f32.mrf.mxu0
          %v1345 = vpop.f32.mrf.mxu0
          %v1346 = vadd.f32 0.0, %v1345
          %v1347 = vpop.f32.mrf.mxu0
          %1348 = vmatprep.mubr.bf16.mxu0 0
          %1349 = vmatmul.mubr.bf16.gmra.mxu0 %v1202
          %v1350 = vpop.f32.mrf.mxu0
          %v1351 = vadd.f32 0.0, %v1350
          %v1352 = vpop.f32.mrf.mxu0
          %v1353 = vpop.f32.mrf.mxu0
          %v1354 = vadd.f32 0.0, %v1353
          %v1355 = vpop.f32.mrf.mxu0
          %1356 = vmatprep.mubr.bf16.mxu0 0
          %1357 = vmatmul.mubr.bf16.gmra.mxu0 %v1203
          %v1358 = vpop.f32.mrf.mxu0
          %v1359 = vadd.f32 0.0, %v1358
          %v1360 = vpop.f32.mrf.mxu0
          %v1361 = vpop.f32.mrf.mxu0
          %v1362 = vadd.f32 0.0, %v1361
          %v1363 = vpop.f32.mrf.mxu0
          %1364 = vdwg.mxu0
          %v1365 = vxor.u32 %v1303, 2147483648
          %v1366 = vxor.u32 %v1306, 2147483648
          %v1367 = vxor.u32 %v1311, 2147483648
          %v1368 = vxor.u32 %v1314, 2147483648
          %v1369 = vxor.u32 %v1319, 2147483648
          %v1370 = vxor.u32 %v1322, 2147483648
          %v1371 = vxor.u32 %v1327, 2147483648
          %v1372 = vxor.u32 %v1330, 2147483648
          %v1373 = vxor.u32 %v1335, 2147483648
          %v1374 = vxor.u32 %v1338, 2147483648
          %v1375 = vxor.u32 %v1343, 2147483648
          %v1376 = vxor.u32 %v1346, 2147483648
          %v1377 = vxor.u32 %v1351, 2147483648
          %v1378 = vxor.u32 %v1354, 2147483648
          %v1379 = vxor.u32 %v1359, 2147483648
          %v1380 = vxor.u32 %v1362, 2147483648
          %v1381 = vmul.f32 %v1365, 1.442695
          %v1382 = vpow.pop %v1381
          %v1383 = vmul.f32 %v1366, 1.442695
          %v1384 = vpow.pop %v1383
          %v1385 = vmul.f32 %v1367, 1.442695
          %v1386 = vpow.pop %v1385
          %v1387 = vmul.f32 %v1368, 1.442695
          %v1388 = vpow.pop %v1387
          %v1389 = vmul.f32 %v1369, 1.442695
          %v1390 = vpow.pop %v1389
          %v1391 = vmul.f32 %v1370, 1.442695
          %v1392 = vpow.pop %v1391
          %v1393 = vmul.f32 %v1371, 1.442695
          %v1394 = vpow.pop %v1393
          %v1395 = vmul.f32 %v1372, 1.442695
          %v1396 = vpow.pop %v1395
          %v1397 = vmul.f32 %v1373, 1.442695
          %v1398 = vpow.pop %v1397
          %v1399 = vmul.f32 %v1374, 1.442695
          %v1400 = vpow.pop %v1399
          %v1401 = vmul.f32 %v1375, 1.442695
          %v1402 = vpow.pop %v1401
          %v1403 = vmul.f32 %v1376, 1.442695
          %v1404 = vpow.pop %v1403
          %v1405 = vmul.f32 %v1377, 1.442695
          %v1406 = vpow.pop %v1405
          %v1407 = vmul.f32 %v1378, 1.442695
          %v1408 = vpow.pop %v1407
          %v1409 = vmul.f32 %v1379, 1.442695
          %v1410 = vpow.pop %v1409
          %v1411 = vmul.f32 %v1380, 1.442695
          %v1412 = vpow.pop %v1411
          %v1413 = vadd.f32 %v1382, 1.0
          %v1414 = vadd.f32 %v1384, 1.0
          %v1415 = vadd.f32 %v1386, 1.0
          %v1416 = vadd.f32 %v1388, 1.0
          %v1417 = vadd.f32 %v1390, 1.0
          %v1418 = vadd.f32 %v1392, 1.0
          %v1419 = vadd.f32 %v1394, 1.0
          %v1420 = vadd.f32 %v1396, 1.0
          %v1421 = vadd.f32 %v1398, 1.0
          %v1422 = vadd.f32 %v1400, 1.0
          %v1423 = vadd.f32 %v1402, 1.0
          %v1424 = vadd.f32 %v1404, 1.0
          %v1425 = vadd.f32 %v1406, 1.0
          %v1426 = vadd.f32 %v1408, 1.0
          %v1427 = vadd.f32 %v1410, 1.0
          %v1428 = vadd.f32 %v1412, 1.0
          %v1429 = vrcp.pop %v1413
          %v1430 = vmul.f32 1.0, %v1429
          %v1431 = vrcp.pop %v1414
          %v1432 = vmul.f32 1.0, %v1431
          %v1433 = vrcp.pop %v1415
          %v1434 = vmul.f32 1.0, %v1433
          %v1435 = vrcp.pop %v1416
          %v1436 = vmul.f32 1.0, %v1435
          %v1437 = vrcp.pop %v1417
          %v1438 = vmul.f32 1.0, %v1437
          %v1439 = vrcp.pop %v1418
          %v1440 = vmul.f32 1.0, %v1439
          %v1441 = vrcp.pop %v1419
          %v1442 = vmul.f32 1.0, %v1441
          %v1443 = vrcp.pop %v1420
          %v1444 = vmul.f32 1.0, %v1443
          %v1445 = vrcp.pop %v1421
          %v1446 = vmul.f32 1.0, %v1445
          %v1447 = vrcp.pop %v1422
          %v1448 = vmul.f32 1.0, %v1447
          %v1449 = vrcp.pop %v1423
          %v1450 = vmul.f32 1.0, %v1449
          %v1451 = vrcp.pop %v1424
          %v1452 = vmul.f32 1.0, %v1451
          %v1453 = vrcp.pop %v1425
          %v1454 = vmul.f32 1.0, %v1453
          %v1455 = vrcp.pop %v1426
          %v1456 = vmul.f32 1.0, %v1455
          %v1457 = vrcp.pop %v1427
          %v1458 = vmul.f32 1.0, %v1457
          %v1459 = vrcp.pop %v1428
          %v1460 = vmul.f32 1.0, %v1459
          %v1461 = vld [vmem:[#allocation2] sm:$0xff]
          %v1462 = vld [vmem:[#allocation2 + $0x8] sm:$0xff]
          %v1463 = vld [vmem:[#allocation2 + $0x10] sm:$0xff]
          %v1464 = vld [vmem:[#allocation2 + $0x18] sm:$0xff]
          %v1465 = vld [vmem:[#allocation2 + $0x20] sm:$0xff]
          %v1466 = vld [vmem:[#allocation2 + $0x28] sm:$0xff]
          %v1467 = vld [vmem:[#allocation2 + $0x30] sm:$0xff]
          %v1468 = vld [vmem:[#allocation2 + $0x38] sm:$0xff]
          %v1469 = vld [vmem:[#allocation2 + $0x40] sm:$0xff]
          %v1470 = vld [vmem:[#allocation2 + $0x48] sm:$0xff]
          %v1471 = vld [vmem:[#allocation2 + $0x50] sm:$0xff]
          %v1472 = vld [vmem:[#allocation2 + $0x58] sm:$0xff]
          %v1473 = vld [vmem:[#allocation2 + $0x60] sm:$0xff]
          %v1474 = vld [vmem:[#allocation2 + $0x68] sm:$0xff]
          %v1475 = vld [vmem:[#allocation2 + $0x70] sm:$0xff]
          %v1476 = vld [vmem:[#allocation2 + $0x78] sm:$0xff]
          %v1477 = vmul.f32 %v1430, %v1461
          %v1478 = vmul.f32 %v1432, %v1462
          %v1479 = vmul.f32 %v1434, %v1463
          %v1480 = vmul.f32 %v1436, %v1464
          %v1481 = vmul.f32 %v1438, %v1465
          %v1482 = vmul.f32 %v1440, %v1466
          %v1483 = vmul.f32 %v1442, %v1467
          %v1484 = vmul.f32 %v1444, %v1468
          %v1485 = vmul.f32 %v1446, %v1469
          %v1486 = vmul.f32 %v1448, %v1470
          %v1487 = vmul.f32 %v1450, %v1471
          %v1488 = vmul.f32 %v1452, %v1472
          %v1489 = vmul.f32 %v1454, %v1473
          %v1490 = vmul.f32 %v1456, %v1474
          %v1491 = vmul.f32 %v1458, %v1475
          %v1492 = vmul.f32 %v1460, %v1476
          %1493 = vst [vmem:[%s439] sm:$0xff] %v1477
          %1494 = vst [vmem:[%s439 + $0x8] sm:$0xff] %v1478
          %1495 = vst [vmem:[%s439 + $0x10] sm:$0xff] %v1479
          %1496 = vst [vmem:[%s439 + $0x18] sm:$0xff] %v1480
          %1497 = vst [vmem:[%s439 + $0x20] sm:$0xff] %v1481
          %1498 = vst [vmem:[%s439 + $0x28] sm:$0xff] %v1482
          %1499 = vst [vmem:[%s439 + $0x30] sm:$0xff] %v1483
          %1500 = vst [vmem:[%s439 + $0x38] sm:$0xff] %v1484
          %1501 = vst [vmem:[%s439 + $0x40] sm:$0xff] %v1485
          %1502 = vst [vmem:[%s439 + $0x48] sm:$0xff] %v1486
          %1503 = vst [vmem:[%s439 + $0x50] sm:$0xff] %v1487
          %1504 = vst [vmem:[%s439 + $0x58] sm:$0xff] %v1488
          %1505 = vst [vmem:[%s439 + $0x60] sm:$0xff] %v1489
          %1506 = vst [vmem:[%s439 + $0x68] sm:$0xff] %v1490
          %1507 = vst [vmem:[%s439 + $0x70] sm:$0xff] %v1491
          %1508 = vst [vmem:[%s439 + $0x78] sm:$0xff] %v1492
        $region76: #{tpu_custom_call.1} parent=47 // pred_fallthru
          _
        %s1509 = sand.u32 %s217, 1
        %s1510 = scalar_lea.sflag [#allocation5], %s1509
        %s1511 = sand.u32 %s217, 1
        %s1512 = smul.addr %s1511, 128
        %s1513 = scalar_lea.vmem [#allocation12], %s1512
        // Predicated region
        $region77: #{tpu_custom_call.1} parent=47 // pred_check
          %p1514 = pneg %p227
        $region78: #{tpu_custom_call.1} parent=47 // pred_check_branch
          %1516 = sbr.rel (%p1514) target = $region80
        $region79: #{tpu_custom_call.1} parent=47 // pred_region
          %s1517 = smul.u32 16, %s34
          %s1519 = ssub.s32 2048, 2048
          %1520 = vsyncadd %s1510, %s1519
          %s1521 = smul.addr %s1517, 128
          %s1522 = scalar_lea.hbm %s7, %s1521
          %s1523 = sshll.u32 %s1513, 4
          %s1524 = int_to_ptr.vmem [resolvable:$true] %s1523
          %1529 = dma.vmem_to_hbm [thread:$0]  %s1524, 2048, %s1522, %s1510, 128, 128, 8
        $region80: #{tpu_custom_call.1} parent=47 // pred_fallthru
          _
      $region48: #{tpu_custom_call.1} parent=5 // pred_fallthru
        _
      %p1530 = scmp.le.s32.totalorder 2, %s25
      // Predicated region
      $region81: #{tpu_custom_call.1} parent=5 // pred_check
        %p1531 = pneg %p1530
      $region82: #{tpu_custom_call.1} parent=5 // pred_check_branch
        %1533 = sbr.rel (%p1531) target = $region84
      $region83: #{tpu_custom_call.1} parent=5 // pred_region
        %s1534 = ssub.s32 %s25, 2
        // Predicated region
        $region85: #{tpu_custom_call.1} parent=83 // pred_check
          %p1535 = pneg %p233
        $region86: #{tpu_custom_call.1} parent=83 // pred_check_branch
          %1537 = sbr.rel (%p1535) target = $region88
        $region87: #{tpu_custom_call.1} parent=83 // pred_region
          %s1538 = sand.u32 %s218, 1
          %s1539 = scalar_lea.sflag [#allocation5], %s1538
          %s1540 = sand.u32 %s218, 1
          %s1541 = smul.addr %s1540, 128
          %s1542 = scalar_lea.vmem [#allocation12], %s1541
          %1543 = dma.done %s1539, 2048
        $region88: #{tpu_custom_call.1} parent=83 // pred_fallthru
          _
      $region84: #{tpu_custom_call.1} parent=5 // pred_fallthru
        _
    $region6: #{tpu_custom_call.1} parent=1 // loop_footer
      %s29 = sadd.s32 1, %s25
    $region7: #{tpu_custom_call.1} parent=1 // loop_footer_branch
      %24 = sbr.rel target = $region3
    $region8: #{tpu_custom_call.1} parent=1 // loop_exit
      _
    %1544 = vsyncpa [#allocation4], 1
    %s1545 = scalar_lea.sflag [#allocation4], 1
    %1546 = vsyncpa %s1545, 1
    %1547 = vsyncpa [#allocation7], 1
    %s1548 = scalar_lea.sflag [#allocation7], 1
    %1549 = vsyncpa %s1548, 1
    %1550 = vsyncpa [#allocation10], 1
    %s1551 = scalar_lea.sflag [#allocation10], 1
    %1552 = vsyncpa %s1551, 1
    %1553 = vsyncpa [#allocation5], 1
    %s1554 = scalar_lea.sflag [#allocation5], 1
    %1555 = vsyncpa %s1554, 1

</llo_original>
